<compile_context>
chip_gen: v7x
topology: tpu7x:2x2x1
jax: 0.10.0
libtpu: 0.0.40
codegen_flags: <defaults>
</compile_context>

<pallas_src>
import jax
import jax.numpy as jnp
from jax.experimental import pallas as pl
from jax.experimental.pallas import tpu as pltpu


def _make_kernel(n_head, d_head, qlen, klen, rlen, scale):
    F = n_head * d_head
    W = ((2 * rlen + 127) // 128) * 128          # lane-padded width for the roll
    contract_last = (((1,), (1,)), ((), ()))     # a[., d] x b[., d] -> a @ b.T

    def _rel_shift(bd):
        # Exact torch._rel_shift semantics on one (qlen, rlen) slice:
        #   out[i, j] = ext[i, qlen - i + j],   ext = [bd | bd shifted up one row]
        # (valid under rlen >= klen+1 and qlen + klen <= 2*rlen, asserted below).
        bd_next = jnp.concatenate(
            [bd[1:, :], jnp.zeros((1, rlen), bd.dtype)], axis=0)       # (qlen, rlen)
        parts = [bd, bd_next]
        if W > 2 * rlen:
            parts.append(jnp.zeros((qlen, W - 2 * rlen), bd.dtype))
        ext = jnp.concatenate(parts, axis=1)                           # (qlen, W)
        # Row i needs a left shift by (qlen - i): one XLU strided rotate
        # (per-row amount = shift + stride*i, jnp.roll direction).
        rolled = pltpu.roll(ext, W - qlen, axis=1, stride=1, stride_axis=0)
        return rolled[:, :klen]                                        # (qlen, klen)

    def kernel(q_ref, k_ref, v_ref, r_ref, w_ref, wo_ref, bias_ref, nmask_ref,
               out_ref, ctx_ref):
        # Head-fused projections: one lane-dense MXU pass per input (bf16 in, f32 acc).
        qh = jnp.dot(q_ref[...], w_ref[0], preferred_element_type=jnp.float32) * scale
        kh = jnp.dot(k_ref[...], w_ref[1], preferred_element_type=jnp.float32)
        vh = jnp.dot(v_ref[...], w_ref[2], preferred_element_type=jnp.float32)
        rh = jnp.dot(r_ref[...], w_ref[3], preferred_element_type=jnp.float32)

        q_ac = qh + bias_ref[0:1, :]      # r_w_bias * scale (pre-scaled in wrapper)
        q_bd = qh + bias_ref[1:2, :]      # r_r_bias * scale
        nmask = nmask_ref[...]            # additive mask, already * -1e30

        ctx_heads = []
        for n in range(n_head):           # n_head is small -> static unroll
            sl = slice(n * d_head, (n + 1) * d_head)
            ac = jax.lax.dot_general(q_ac[:, sl], kh[:, sl], contract_last,
                                     preferred_element_type=jnp.float32)  # (qlen, klen)
            bd = jax.lax.dot_general(q_bd[:, sl], rh[:, sl], contract_last,
                                     preferred_element_type=jnp.float32)  # (qlen, rlen)
            score = ac + _rel_shift(bd) + nmask
            m = jnp.max(score, axis=1, keepdims=True)
            e = jnp.exp(score - m)
            p = e * pl.reciprocal(jnp.sum(e, axis=1, keepdims=True), approx=True)
            # TODO(synk): drop_attn (nn.Dropout) omitted — eval-mode identity.
            ctx_heads.append(jnp.dot(p, vh[:, sl],
                                     preferred_element_type=jnp.float32))

        ctx = ctx_heads[0] if n_head == 1 else jnp.concatenate(ctx_heads, axis=1)
        ctx_ref[...] = ctx                                   # (qlen, F) lane-dense
        out_ref[...] = jnp.dot(ctx, wo_ref[...],
                               preferred_element_type=jnp.float32)   # (qlen, d_model)

    return kernel


def relative_multihead_attention(q, k, v, pos_emb, attn_mask, params,
                                 n_head, d_head):
    qlen, B, H = q.shape
    klen = k.shape[0]
    rlen = pos_emb.shape[0]
    F = n_head * d_head
    assert H % 128 == 0 and F % 128 == 0, \
        "lane-dense layout expects d_model and n_head*d_head to be multiples of 128"
    assert rlen >= klen + 1, "rel_shift needs pos_emb len >= klen + 1"
    assert qlen + klen <= 2 * rlen
    scale = 1.0 / d_head ** 0.5
    cdt = jnp.bfloat16   # matmul-operand dtype: halves HBM traffic, 2x MXU rate

    # Free row-major reshapes: (seq, B, H) -> (seq, B*H); batch column picked
    # by the BlockSpec index_map (no HBM transpose passes).
    q2 = q.reshape(qlen, B * H).astype(cdt)
    k2 = k.reshape(klen, B * H).astype(cdt)
    v2 = v.reshape(klen, B * H).astype(cdt)
    r2 = pos_emb.reshape(rlen, B * H).astype(cdt)

    # One-time parameter prep (glue): fuse heads onto the lane axis, stack the
    # four projection weights into one operand, pre-scale the rel biases.
    w_qkvr = jnp.stack([params['q'].reshape(H, F), params['k'].reshape(H, F),
                        params['v'].reshape(H, F), params['r'].reshape(H, F)]
                       ).astype(cdt)                                  # (4, H, F)
    wo = jnp.transpose(params['o'], (1, 2, 0)).reshape(F, H).astype(jnp.float32)
    biases = (jnp.stack([params['r_w_bias'].reshape(F),
                         params['r_r_bias'].reshape(F)]) * scale
              ).astype(jnp.float32)                                   # (2, F)
    nmask = (jnp.zeros((qlen, klen), jnp.float32) if attn_mask is None
             else attn_mask.astype(jnp.float32) * (-1e30))            # additive

    kernel = _make_kernel(n_head, d_head, qlen, klen, rlen, scale)

    grid_spec = pltpu.PrefetchScalarGridSpec(
        num_scalar_prefetch=0,
        grid=(B,),
        in_specs=[
            pl.BlockSpec((qlen, H), lambda b: (0, b)),       # q
            pl.BlockSpec((klen, H), lambda b: (0, b)),       # k
            pl.BlockSpec((klen, H), lambda b: (0, b)),       # v
            pl.BlockSpec((rlen, H), lambda b: (0, b)),       # pos_emb
            pl.BlockSpec((4, H, F), lambda b: (0, 0, 0)),    # stacked wq/wk/wv/wr
            pl.BlockSpec((F, H), lambda b: (0, 0)),          # output projection
            pl.BlockSpec((2, F), lambda b: (0, 0)),          # scaled rel biases
            pl.BlockSpec((qlen, klen), lambda b: (0, 0)),    # additive mask
        ],
        out_specs=[
            pl.BlockSpec((qlen, H), lambda b: (0, b)),       # attn_out (lane-dense)
            pl.BlockSpec((qlen, F), lambda b: (0, b)),       # per-head context
        ],
    )

    out2, ctx2 = pl.pallas_call(
        kernel,
        out_shape=(jax.ShapeDtypeStruct((qlen, B * H), jnp.float32),
                   jax.ShapeDtypeStruct((qlen, B * F), jnp.float32)),
        grid_spec=grid_spec,
        compiler_params=pltpu.CompilerParams(dimension_semantics=("parallel",)),
    )(q2, k2, v2, r2, w_qkvr, wo, biases, nmask)

    attn_out = out2.reshape(qlen, B, H)                          # free reshape
    ctx = ctx2.reshape(qlen, B, n_head, d_head)
    vec_mean = ctx.sum(axis=2) * (1.0 / n_head)                  # tiny wrapper reduce
    return attn_out, vec_mean


def _reference(q, k, v, pos_emb, attn_mask, params, n_head, d_head):
    """Pure-JAX mirror of the PyTorch forward (bf16 matmul operands like the kernel)."""
    P = jax.lax.Precision.HIGHEST
    bf = lambda a: a.astype(jnp.bfloat16).astype(jnp.float32)
    qh = jnp.einsum('ibh,hnd->ibnd', bf(q), bf(params['q']), precision=P)
    kh = jnp.einsum('ibh,hnd->ibnd', bf(k), bf(params['k']), precision=P)
    vh = jnp.einsum('ibh,hnd->ibnd', bf(v), bf(params['v']), precision=P)
    rh = jnp.einsum('ibh,hnd->ibnd', bf(pos_emb), bf(params['r']), precision=P)
    ac = jnp.einsum('ibnd,jbnd->ijbn', qh + params['r_w_bias'], kh, precision=P)
    bd = jnp.einsum('ibnd,jbnd->ijbn', qh + params['r_r_bias'], rh, precision=P)
    qn, rn, bn, nn = bd.shape
    x = bd.reshape(rn, qn, bn, nn)[1:]
    bd = x.reshape(qn, rn - 1, bn, nn)[:, :ac.shape[1]]
    score = (ac + bd) * (1.0 / d_head ** 0.5)
    if attn_mask is not None:
        score = score - 1e30 * attn_mask[:, :, None, None]
    prob = jax.nn.softmax(score, axis=1)
    vec = jnp.einsum('ijbn,jbnd->ibnd', prob, vh, precision=P)
    out = jnp.einsum('ibnd,hnd->ibh', vec, params['o'].astype(jnp.float32), precision=P)
    return out, vec.sum(axis=2) / n_head


if __name__ == "__main__":
    d_model, n_head, d_head = 128, 2, 64      # d_model = n_head*d_head = 128 (lane-dense)
    qlen, klen, B = 8, 8, 2
    rlen = klen + 1                           # _rel_shift requires pos length >= klen + 1

    key = jax.random.PRNGKey(0)
    ks = jax.random.split(key, 11)
    params = {
        'q': 0.1 * jax.random.normal(ks[0], (d_model, n_head, d_head), jnp.float32),
        'k': 0.1 * jax.random.normal(ks[1], (d_model, n_head, d_head), jnp.float32),
        'v': 0.1 * jax.random.normal(ks[2], (d_model, n_head, d_head), jnp.float32),
        'r': 0.1 * jax.random.normal(ks[3], (d_model, n_head, d_head), jnp.float32),
        'o': 0.1 * jax.random.normal(ks[4], (d_model, n_head, d_head), jnp.float32),
        'r_w_bias': 0.1 * jax.random.normal(ks[5], (n_head, d_head), jnp.float32),
        'r_r_bias': 0.1 * jax.random.normal(ks[6], (n_head, d_head), jnp.float32),
    }

    q = jax.random.normal(ks[7], (qlen, B, d_model), jnp.float32)
    k = jax.random.normal(ks[8], (klen, B, d_model), jnp.float32)
    v = jax.random.normal(ks[9], (klen, B, d_model), jnp.float32)
    pos_emb = jax.random.normal(ks[10], (rlen, B, d_model), jnp.float32)
    # Float causal mask (1.0 = masked), broadcast over batch/heads as in torch.
    attn_mask = (jnp.arange(klen)[None, :] > jnp.arange(qlen)[:, None]).astype(jnp.float32)

    out, vec_mean = relative_multihead_attention(
        q, k, v, pos_emb, attn_mask, params, n_head, d_head)
    jax.block_until_ready((out, vec_mean))

    ref_out, ref_vec = _reference(q, k, v, pos_emb, attn_mask, params, n_head, d_head)
    assert out.shape == (qlen, B, d_model) and vec_mean.shape == (qlen, B, d_head)
    err_out = float(jnp.max(jnp.abs(out - ref_out)))
    err_vec = float(jnp.max(jnp.abs(vec_mean - ref_vec)))
    assert jnp.allclose(out, ref_out, atol=1e-2, rtol=1e-2), err_out
    assert jnp.allclose(vec_mean, ref_vec, atol=1e-2, rtol=1e-2), err_vec
    print("KERNEL_OK")
</pallas_src>

<mosaic_0001>
module attributes {stable_mosaic.version = 11 : i64} {
  func.func @kernel(%arg0: i32, %arg1: memref<8x128xbf16, #tpu.memory_space<vmem>>, %arg2: memref<8x128xbf16, #tpu.memory_space<vmem>>, %arg3: memref<8x128xbf16, #tpu.memory_space<vmem>>, %arg4: memref<9x128xbf16, #tpu.memory_space<vmem>>, %arg5: memref<4x128x128xbf16, #tpu.memory_space<vmem>>, %arg6: memref<128x128xf32, #tpu.memory_space<vmem>>, %arg7: memref<2x128xf32, #tpu.memory_space<vmem>>, %arg8: memref<8x8xf32, #tpu.memory_space<vmem>>, %arg9: memref<8x128xf32, #tpu.memory_space<vmem>>, %arg10: memref<8x128xf32, #tpu.memory_space<vmem>>) attributes {dimension_semantics = [#tpu.dimension_semantics<parallel>], iteration_bounds = array<i64: 2>, scalar_prefetch = 0 : i64, scratch_operands = 0 : i64, tpu.core_type = #tpu.core_type<tc>, window_params = [{transform_indices = @transform_0, window_bounds = array<i64: 8, 128>}, {transform_indices = @transform_1, window_bounds = array<i64: 8, 128>}, {transform_indices = @transform_2, window_bounds = array<i64: 8, 128>}, {transform_indices = @transform_3, window_bounds = array<i64: 9, 128>}, {pipeline_mode = #tpu.pipeline_mode<synchronous>, transform_indices = @transform_4, window_bounds = array<i64: 4, 128, 128>}, {pipeline_mode = #tpu.pipeline_mode<synchronous>, transform_indices = @transform_5, window_bounds = array<i64: 128, 128>}, {pipeline_mode = #tpu.pipeline_mode<synchronous>, transform_indices = @transform_6, window_bounds = array<i64: 2, 128>}, {pipeline_mode = #tpu.pipeline_mode<synchronous>, transform_indices = @transform_7, window_bounds = array<i64: 8, 8>}, {transform_indices = @transform_8, window_bounds = array<i64: 8, 128>}, {transform_indices = @transform_9, window_bounds = array<i64: 8, 128>}]} {
    %c0 = arith.constant 0 : index
    %c0_0 = arith.constant 0 : index
    %0 = vector.load %arg1[%c0, %c0_0] : memref<8x128xbf16, #tpu.memory_space<vmem>>, vector<8x128xbf16>
    %c0_1 = arith.constant 0 : index
    %c0_2 = arith.constant 0 : index
    %c0_3 = arith.constant 0 : index
    %1 = vector.load %arg5[%c0_1, %c0_2, %c0_3] : memref<4x128x128xbf16, #tpu.memory_space<vmem>>, vector<1x128x128xbf16>
    %2 = vector.shape_cast %1 : vector<1x128x128xbf16> to vector<128x128xbf16>
    %cst = arith.constant dense<0.000000e+00> : vector<8x128xf32>
    %3 = tpu.matmul %0, %2, %cst {dimension_numbers = #tpu.dot_dimension_numbers<[1], [0], [0], [1], [0, 0, 1, 1], [], []>} : vector<8x128xbf16>, vector<128x128xbf16>, vector<8x128xf32> -> vector<8x128xf32>
    %cst_4 = arith.constant 1.250000e-01 : f32
    %4 = vector.broadcast %cst_4 : f32 to vector<8x128xf32>
    %5 = arith.mulf %3, %4 : vector<8x128xf32>
    %c0_5 = arith.constant 0 : index
    %c0_6 = arith.constant 0 : index
    %6 = vector.load %arg2[%c0_5, %c0_6] : memref<8x128xbf16, #tpu.memory_space<vmem>>, vector<8x128xbf16>
    %c1 = arith.constant 1 : index
    %c0_7 = arith.constant 0 : index
    %c0_8 = arith.constant 0 : index
    %7 = vector.load %arg5[%c1, %c0_7, %c0_8] : memref<4x128x128xbf16, #tpu.memory_space<vmem>>, vector<1x128x128xbf16>
    %8 = vector.shape_cast %7 : vector<1x128x128xbf16> to vector<128x128xbf16>
    %cst_9 = arith.constant dense<0.000000e+00> : vector<8x128xf32>
    %9 = tpu.matmul %6, %8, %cst_9 {dimension_numbers = #tpu.dot_dimension_numbers<[1], [0], [0], [1], [0, 0, 1, 1], [], []>} : vector<8x128xbf16>, vector<128x128xbf16>, vector<8x128xf32> -> vector<8x128xf32>
    %c0_10 = arith.constant 0 : index
    %c0_11 = arith.constant 0 : index
    %10 = vector.load %arg3[%c0_10, %c0_11] : memref<8x128xbf16, #tpu.memory_space<vmem>>, vector<8x128xbf16>
    %c2 = arith.constant 2 : index
    %c0_12 = arith.constant 0 : index
    %c0_13 = arith.constant 0 : index
    %11 = vector.load %arg5[%c2, %c0_12, %c0_13] : memref<4x128x128xbf16, #tpu.memory_space<vmem>>, vector<1x128x128xbf16>
    %12 = vector.shape_cast %11 : vector<1x128x128xbf16> to vector<128x128xbf16>
    %cst_14 = arith.constant dense<0.000000e+00> : vector<8x128xf32>
    %13 = tpu.matmul %10, %12, %cst_14 {dimension_numbers = #tpu.dot_dimension_numbers<[1], [0], [0], [1], [0, 0, 1, 1], [], []>} : vector<8x128xbf16>, vector<128x128xbf16>, vector<8x128xf32> -> vector<8x128xf32>
    %c0_15 = arith.constant 0 : index
    %c0_16 = arith.constant 0 : index
    %14 = vector.load %arg4[%c0_15, %c0_16] : memref<9x128xbf16, #tpu.memory_space<vmem>>, vector<9x128xbf16>
    %c3 = arith.constant 3 : index
    %c0_17 = arith.constant 0 : index
    %c0_18 = arith.constant 0 : index
    %15 = vector.load %arg5[%c3, %c0_17, %c0_18] : memref<4x128x128xbf16, #tpu.memory_space<vmem>>, vector<1x128x128xbf16>
    %16 = vector.shape_cast %15 : vector<1x128x128xbf16> to vector<128x128xbf16>
    %cst_19 = arith.constant dense<0.000000e+00> : vector<9x128xf32>
    %17 = tpu.matmul %14, %16, %cst_19 {dimension_numbers = #tpu.dot_dimension_numbers<[1], [0], [0], [1], [0, 0, 1, 1], [], []>} : vector<9x128xbf16>, vector<128x128xbf16>, vector<9x128xf32> -> vector<9x128xf32>
    %c0_20 = arith.constant 0 : index
    %c0_21 = arith.constant 0 : index
    %18 = vector.load %arg7[%c0_20, %c0_21] : memref<2x128xf32, #tpu.memory_space<vmem>>, vector<1x128xf32>
    %19 = vector.broadcast %18 : vector<1x128xf32> to vector<8x128xf32>
    %20 = arith.addf %5, %19 : vector<8x128xf32>
    %c1_22 = arith.constant 1 : index
    %c0_23 = arith.constant 0 : index
    %21 = vector.load %arg7[%c1_22, %c0_23] : memref<2x128xf32, #tpu.memory_space<vmem>>, vector<1x128xf32>
    %22 = vector.broadcast %21 : vector<1x128xf32> to vector<8x128xf32>
    %23 = arith.addf %5, %22 : vector<8x128xf32>
    %c0_24 = arith.constant 0 : index
    %c0_25 = arith.constant 0 : index
    %24 = vector.load %arg8[%c0_24, %c0_25] : memref<8x8xf32, #tpu.memory_space<vmem>>, vector<8x8xf32>
    %25 = vector.extract_strided_slice %20 {offsets = [0, 0], sizes = [8, 64], strides = [1, 1]} : vector<8x128xf32> to vector<8x64xf32>
    %26 = vector.extract_strided_slice %9 {offsets = [0, 0], sizes = [8, 64], strides = [1, 1]} : vector<8x128xf32> to vector<8x64xf32>
    %cst_26 = arith.constant dense<0.000000e+00> : vector<8x8xf32>
    %27 = tpu.matmul %25, %26, %cst_26 {dimension_numbers = #tpu.dot_dimension_numbers<[1], [1], [0], [0], [0, 0, 1, 0], [], []>} : vector<8x64xf32>, vector<8x64xf32>, vector<8x8xf32> -> vector<8x8xf32>
    %28 = vector.extract_strided_slice %23 {offsets = [0, 0], sizes = [8, 64], strides = [1, 1]} : vector<8x128xf32> to vector<8x64xf32>
    %29 = vector.extract_strided_slice %17 {offsets = [0, 0], sizes = [9, 64], strides = [1, 1]} : vector<9x128xf32> to vector<9x64xf32>
    %cst_27 = arith.constant dense<0.000000e+00> : vector<8x9xf32>
    %30 = tpu.matmul %28, %29, %cst_27 {dimension_numbers = #tpu.dot_dimension_numbers<[1], [1], [0], [0], [0, 0, 1, 0], [], []>} : vector<8x64xf32>, vector<9x64xf32>, vector<8x9xf32> -> vector<8x9xf32>
    %31 = vector.extract_strided_slice %30 {offsets = [1, 0], sizes = [7, 9], strides = [1, 1]} : vector<8x9xf32> to vector<7x9xf32>
    %cst_28 = arith.constant 0.000000e+00 : f32
    %32 = vector.broadcast %cst_28 : f32 to vector<1x9xf32>
    %33 = tpu.concatenate %31, %32 in 0 : vector<7x9xf32>, vector<1x9xf32> -> vector<8x9xf32>
    %cst_29 = arith.constant 0.000000e+00 : f32
    %34 = vector.broadcast %cst_29 : f32 to vector<8x110xf32>
    %35 = tpu.concatenate %30, %33, %34 in 1 : vector<8x9xf32>, vector<8x9xf32>, vector<8x110xf32> -> vector<8x128xf32>
    %c120_i32 = arith.constant 120 : i32
    %36 = tpu.dynamic_rotate %35 by %c120_i32 dim 1 {stride = 1 : si32, stride_dimension = 0 : si32} : vector<8x128xf32>, i32 -> vector<8x128xf32>
    %37 = vector.extract_strided_slice %36 {offsets = [0, 0], sizes = [8, 8], strides = [1, 1]} : vector<8x128xf32> to vector<8x8xf32>
    %38 = arith.addf %27, %37 : vector<8x8xf32>
    %39 = arith.addf %38, %24 : vector<8x8xf32>
    %cst_30 = arith.constant dense<0xFF800000> : vector<8xf32>
    %40 = vector.multi_reduction <maximumf>, %39, %cst_30 [1] : vector<8x8xf32> to vector<8xf32>
    %41 = vector.shape_cast %40 : vector<8xf32> to vector<8x1xf32>
    %42 = vector.broadcast %41 : vector<8x1xf32> to vector<8x8xf32>
    %43 = arith.subf %39, %42 : vector<8x8xf32>
    %44 = math.exp %43 : vector<8x8xf32>
    %cst_31 = arith.constant dense<0.000000e+00> : vector<8xf32>
    %45 = vector.multi_reduction <add>, %44, %cst_31 [1] : vector<8x8xf32> to vector<8xf32>
    %46 = vector.shape_cast %45 : vector<8xf32> to vector<8x1xf32>
    %47 = tpu.reciprocal %46 {approx = true} : vector<8x1xf32> -> vector<8x1xf32>
    %48 = vector.broadcast %47 : vector<8x1xf32> to vector<8x8xf32>
    %49 = arith.mulf %44, %48 : vector<8x8xf32>
    %50 = vector.extract_strided_slice %13 {offsets = [0, 0], sizes = [8, 64], strides = [1, 1]} : vector<8x128xf32> to vector<8x64xf32>
    %cst_32 = arith.constant dense<0.000000e+00> : vector<8x64xf32>
    %51 = tpu.matmul %49, %50, %cst_32 {dimension_numbers = #tpu.dot_dimension_numbers<[1], [0], [0], [1], [0, 0, 1, 1], [], []>} : vector<8x8xf32>, vector<8x64xf32>, vector<8x64xf32> -> vector<8x64xf32>
    %52 = vector.extract_strided_slice %20 {offsets = [0, 64], sizes = [8, 64], strides = [1, 1]} : vector<8x128xf32> to vector<8x64xf32>
    %53 = vector.extract_strided_slice %9 {offsets = [0, 64], sizes = [8, 64], strides = [1, 1]} : vector<8x128xf32> to vector<8x64xf32>
    %cst_33 = arith.constant dense<0.000000e+00> : vector<8x8xf32>
    %54 = tpu.matmul %52, %53, %cst_33 {dimension_numbers = #tpu.dot_dimension_numbers<[1], [1], [0], [0], [0, 0, 1, 0], [], []>} : vector<8x64xf32>, vector<8x64xf32>, vector<8x8xf32> -> vector<8x8xf32>
    %55 = vector.extract_strided_slice %23 {offsets = [0, 64], sizes = [8, 64], strides = [1, 1]} : vector<8x128xf32> to vector<8x64xf32>
    %56 = vector.extract_strided_slice %17 {offsets = [0, 64], sizes = [9, 64], strides = [1, 1]} : vector<9x128xf32> to vector<9x64xf32>
    %cst_34 = arith.constant dense<0.000000e+00> : vector<8x9xf32>
    %57 = tpu.matmul %55, %56, %cst_34 {dimension_numbers = #tpu.dot_dimension_numbers<[1], [1], [0], [0], [0, 0, 1, 0], [], []>} : vector<8x64xf32>, vector<9x64xf32>, vector<8x9xf32> -> vector<8x9xf32>
    %58 = vector.extract_strided_slice %57 {offsets = [1, 0], sizes = [7, 9], strides = [1, 1]} : vector<8x9xf32> to vector<7x9xf32>
    %cst_35 = arith.constant 0.000000e+00 : f32
    %59 = vector.broadcast %cst_35 : f32 to vector<1x9xf32>
    %60 = tpu.concatenate %58, %59 in 0 : vector<7x9xf32>, vector<1x9xf32> -> vector<8x9xf32>
    %cst_36 = arith.constant 0.000000e+00 : f32
    %61 = vector.broadcast %cst_36 : f32 to vector<8x110xf32>
    %62 = tpu.concatenate %57, %60, %61 in 1 : vector<8x9xf32>, vector<8x9xf32>, vector<8x110xf32> -> vector<8x128xf32>
    %c120_i32_37 = arith.constant 120 : i32
    %63 = tpu.dynamic_rotate %62 by %c120_i32_37 dim 1 {stride = 1 : si32, stride_dimension = 0 : si32} : vector<8x128xf32>, i32 -> vector<8x128xf32>
    %64 = vector.extract_strided_slice %63 {offsets = [0, 0], sizes = [8, 8], strides = [1, 1]} : vector<8x128xf32> to vector<8x8xf32>
    %65 = arith.addf %54, %64 : vector<8x8xf32>
    %66 = arith.addf %65, %24 : vector<8x8xf32>
    %cst_38 = arith.constant dense<0xFF800000> : vector<8xf32>
    %67 = vector.multi_reduction <maximumf>, %66, %cst_38 [1] : vector<8x8xf32> to vector<8xf32>
    %68 = vector.shape_cast %67 : vector<8xf32> to vector<8x1xf32>
    %69 = vector.broadcast %68 : vector<8x1xf32> to vector<8x8xf32>
    %70 = arith.subf %66, %69 : vector<8x8xf32>
    %71 = math.exp %70 : vector<8x8xf32>
    %cst_39 = arith.constant dense<0.000000e+00> : vector<8xf32>
    %72 = vector.multi_reduction <add>, %71, %cst_39 [1] : vector<8x8xf32> to vector<8xf32>
    %73 = vector.shape_cast %72 : vector<8xf32> to vector<8x1xf32>
    %74 = tpu.reciprocal %73 {approx = true} : vector<8x1xf32> -> vector<8x1xf32>
    %75 = vector.broadcast %74 : vector<8x1xf32> to vector<8x8xf32>
    %76 = arith.mulf %71, %75 : vector<8x8xf32>
    %77 = vector.extract_strided_slice %13 {offsets = [0, 64], sizes = [8, 64], strides = [1, 1]} : vector<8x128xf32> to vector<8x64xf32>
    %cst_40 = arith.constant dense<0.000000e+00> : vector<8x64xf32>
    %78 = tpu.matmul %76, %77, %cst_40 {dimension_numbers = #tpu.dot_dimension_numbers<[1], [0], [0], [1], [0, 0, 1, 1], [], []>} : vector<8x8xf32>, vector<8x64xf32>, vector<8x64xf32> -> vector<8x64xf32>
    %79 = tpu.concatenate %51, %78 in 1 : vector<8x64xf32>, vector<8x64xf32> -> vector<8x128xf32>
    %c0_41 = arith.constant 0 : index
    %c0_42 = arith.constant 0 : index
    %80 = vector.load %arg10[%c0_41, %c0_42] : memref<8x128xf32, #tpu.memory_space<vmem>>, vector<8x128xf32>
    tpu.vector_store %arg10[%c0_41, %c0_42], %79 {strides = array<i32>} : memref<8x128xf32, #tpu.memory_space<vmem>>, vector<8x128xf32>,
    %c0_43 = arith.constant 0 : index
    %c0_44 = arith.constant 0 : index
    %81 = vector.load %arg6[%c0_43, %c0_44] : memref<128x128xf32, #tpu.memory_space<vmem>>, vector<128x128xf32>
    %cst_45 = arith.constant dense<0.000000e+00> : vector<8x128xf32>
    %82 = tpu.matmul %79, %81, %cst_45 {dimension_numbers = #tpu.dot_dimension_numbers<[1], [0], [0], [1], [0, 0, 1, 1], [], []>} : vector<8x128xf32>, vector<128x128xf32>, vector<8x128xf32> -> vector<8x128xf32>
    %c0_46 = arith.constant 0 : index
    %c0_47 = arith.constant 0 : index
    %83 = vector.load %arg9[%c0_46, %c0_47] : memref<8x128xf32, #tpu.memory_space<vmem>>, vector<8x128xf32>
    tpu.vector_store %arg9[%c0_46, %c0_47], %82 {strides = array<i32>} : memref<8x128xf32, #tpu.memory_space<vmem>>, vector<8x128xf32>,
    return
  }
  func.func @transform_0(%arg0: i32) -> (i32, i32) {
    %c0_i32 = arith.constant 0 : i32
    %c0_i32_0 = arith.constant 0 : i32
    return %c0_i32, %arg0 : i32, i32
  }
  func.func @transform_1(%arg0: i32) -> (i32, i32) {
    %c0_i32 = arith.constant 0 : i32
    %c0_i32_0 = arith.constant 0 : i32
    return %c0_i32, %arg0 : i32, i32
  }
  func.func @transform_2(%arg0: i32) -> (i32, i32) {
    %c0_i32 = arith.constant 0 : i32
    %c0_i32_0 = arith.constant 0 : i32
    return %c0_i32, %arg0 : i32, i32
  }
  func.func @transform_3(%arg0: i32) -> (i32, i32) {
    %c0_i32 = arith.constant 0 : i32
    %c0_i32_0 = arith.constant 0 : i32
    return %c0_i32, %arg0 : i32, i32
  }
  func.func @transform_4(%arg0: i32) -> (i32, i32, i32) {
    %c0_i32 = arith.constant 0 : i32
    %c0_i32_0 = arith.constant 0 : i32
    %c0_i32_1 = arith.constant 0 : i32
    %c0_i32_2 = arith.constant 0 : i32
    return %c0_i32, %c0_i32_0, %c0_i32_1 : i32, i32, i32
  }
  func.func @transform_5(%arg0: i32) -> (i32, i32) {
    %c0_i32 = arith.constant 0 : i32
    %c0_i32_0 = arith.constant 0 : i32
    %c0_i32_1 = arith.constant 0 : i32
    return %c0_i32, %c0_i32_0 : i32, i32
  }
  func.func @transform_6(%arg0: i32) -> (i32, i32) {
    %c0_i32 = arith.constant 0 : i32
    %c0_i32_0 = arith.constant 0 : i32
    %c0_i32_1 = arith.constant 0 : i32
    return %c0_i32, %c0_i32_0 : i32, i32
  }
  func.func @transform_7(%arg0: i32) -> (i32, i32) {
    %c0_i32 = arith.constant 0 : i32
    %c0_i32_0 = arith.constant 0 : i32
    %c0_i32_1 = arith.constant 0 : i32
    return %c0_i32, %c0_i32_0 : i32, i32
  }
  func.func @transform_8(%arg0: i32) -> (i32, i32) {
    %c0_i32 = arith.constant 0 : i32
    %c0_i32_0 = arith.constant 0 : i32
    return %c0_i32, %arg0 : i32, i32
  }
  func.func @transform_9(%arg0: i32) -> (i32, i32) {
    %c0_i32 = arith.constant 0 : i32
    %c0_i32_0 = arith.constant 0 : i32
    return %c0_i32, %arg0 : i32, i32
  }
}

</mosaic_0001>

<llo_original>
// kernel: tpu_custom_call.1
$region0: #{tpu_custom_call.1}
  #allocation0 [shape = 'u32[]', space=smem, size = 0x4, offset = 0x4, fixed_abs, tag = 'smem constant byte address 0x4 - core index']
  #allocation1 [shape = 'u32[144,128]{1,0:T(1,128)}', space=vmem, size = 0x12000, scoped, tag = 'internal scratch']
  %s0 = inlined_call_operand.hbm [shape: bf16[8,256], index: 0, kind: input, shape index: {}]
  %s1 = inlined_call_operand.hbm [shape: bf16[8,256], index: 1, kind: input, shape index: {}]
  %s2 = inlined_call_operand.hbm [shape: bf16[8,256], index: 2, kind: input, shape index: {}]
  %s3 = inlined_call_operand.hbm [shape: bf16[9,256], index: 3, kind: input, shape index: {}]
  %s4 = inlined_call_operand.hbm [shape: bf16[4,128,128], index: 4, kind: input, shape index: {}]
  %s5 = inlined_call_operand.hbm [shape: f32[128,128], index: 5, kind: input, shape index: {}]
  %s6 = inlined_call_operand.vmem [shape: f32[2,128], index: 6, kind: input, shape index: {}]
  %s7 = inlined_call_operand.vmem [shape: f32[8,8], index: 7, kind: input, shape index: {}]
  %s8 = inlined_call_operand.hbm [shape: f32[8,256], index: 8, kind: output, shape index: {0}]
  %s9 = inlined_call_operand.hbm [shape: f32[8,256], index: 9, kind: output, shape index: {1}]
  %10 = xla_tuple %s8, %s9
  %s11 = sld [smem:[#allocation0]]
  $region97: #{tpu_custom_call.1} parent=0
    _
  %s13 = ssub.s32 1, %s11
  %s14 = scalar_select 0, %s13, %s11
  $region1: #{tpu_custom_call.1} parent=0
    #allocation2 [shape = 'u8[4096]{0}', space=vmem, size = 0x1000, scoped, tag = 'input window, operand 0']
    #allocation3 [shape = 's32[2]{0}', space=sflag, size = 0x8, scoped, tag = 'scoped memory for tpu_custom_call.1']
    #allocation4 [shape = 's32[2]{0}', space=sflag, size = 0x8, scoped, tag = 'scoped memory for tpu_custom_call.1']
    #allocation5 [shape = 'u8[4096]{0}', space=vmem, size = 0x1000, scoped, tag = 'input window, operand 1']
    #allocation6 [shape = 's32[2]{0}', space=sflag, size = 0x8, scoped, tag = 'scoped memory for tpu_custom_call.1']
    #allocation7 [shape = 'u8[4096]{0}', space=vmem, size = 0x1000, scoped, tag = 'input window, operand 2']
    #allocation8 [shape = 'u8[8192]{0}', space=vmem, size = 0x2000, scoped, tag = 'input window, operand 3']
    #allocation9 [shape = 's32[2]{0}', space=sflag, size = 0x8, scoped, tag = 'scoped memory for tpu_custom_call.1']
    #allocation10 [shape = 'u8[131072]{0}', space=vmem, size = 0x20000, scoped, tag = 'input window, operand 4, single buffered']
    #allocation11 [shape = 'u8[65536]{0}', space=vmem, size = 0x10000, scoped, tag = 'input window, operand 5, single buffered']
    #allocation12 [shape = 's32[1]{0}', space=sflag, size = 0x4, scoped, tag = 'scoped memory for tpu_custom_call.1']
    #allocation13 [shape = 'u8[8192]{0}', space=vmem, size = 0x2000, scoped, tag = 'output window, operand 0']
    #allocation14 [shape = 'u8[8192]{0}', space=vmem, size = 0x2000, scoped, tag = 'output window, operand 1']
    #allocation15 [shape = 's32[2]{0}', space=sflag, size = 0x8, scoped, tag = 'scoped memory for tpu_custom_call.1']
    %15 = vsyncpa [#allocation3], 0
    %s16 = scalar_lea.sflag [#allocation3], 1
    %17 = vsyncpa %s16, 0
    %18 = vsyncpa [#allocation6], 0
    %s19 = scalar_lea.sflag [#allocation6], 1
    %20 = vsyncpa %s19, 0
    %21 = vsyncpa [#allocation9], 0
    %s22 = scalar_lea.sflag [#allocation9], 1
    %23 = vsyncpa %s22, 0
    %24 = vsyncpa [#allocation12], 0
    %25 = vsyncpa [#allocation4], 0
    %s26 = scalar_lea.sflag [#allocation4], 1
    %27 = vsyncpa %s26, 0
    %28 = vsyncpa [#allocation15], 0
    %s29 = scalar_lea.sflag [#allocation15], 1
    %30 = vsyncpa %s29, 0
    loop: start=0, step=1, limit=4
    $region2: #{tpu_custom_call.1} parent=1 // loop_pre_header
      _
    $region3: #{tpu_custom_call.1} parent=1 // loop_header
      %s32 = sphi 0, %s36
      %p33 = scmp.ge.s32.totalorder %s32, 4
      %s42 = sphi 0, %s44
      %s45 = sphi 0, %s42
      %s46 = sphi 0, %s45
      %s62 = sphi 0, %s46
      %s68 = sphi 0, %s70
      %s71 = sphi 0, %s68
      %s72 = sphi 0, %s71
      %s88 = sphi 0, %s72
      %s94 = sphi 0, %s96
      %s97 = sphi 0, %s94
      %s98 = sphi 0, %s97
      %s114 = sphi 0, %s98
      %s120 = sphi 0, %s122
      %s123 = sphi 0, %s120
      %s124 = sphi 0, %s123
      %s140 = sphi 0, %s124
      %s144 = sphi 0, %s144
      %s146 = sphi 0, %s144
      %s147 = sphi 0, %s146
      %s161 = sphi 0, %s147
      %s165 = sphi 0, %s165
      %s167 = sphi 0, %s165
      %s168 = sphi 0, %s167
      %s182 = sphi 0, %s168
      %s186 = sphi 0, %s186
      %s188 = sphi 0, %s186
      %s189 = sphi 0, %s188
      %s203 = sphi 0, %s189
      %s207 = sphi 0, %s207
      %s209 = sphi 0, %s207
      %s210 = sphi 0, %s209
      %s224 = sphi 0, %s210
      %s230 = sphi 0, %s232
      %s233 = sphi 0, %s230
      %s234 = sphi 0, %s233
      %s250 = sphi 0, %s234
      %s256 = sphi 0, %s258
      %s259 = sphi 0, %s256
      %s260 = sphi 0, %s259
      %s276 = sphi 0, %s260
    $region4: #{tpu_custom_call.1} parent=1 // loop_header_branch
      %35 = sbr.rel (%p33) target = $region8
    $region5: #{tpu_custom_call.1} parent=1 // loop_body
      %s37 = ssub.s32 %s32, 1
      %s38 = ssub.s32 %s32, 2
      %s39 = sadd.s32 %s32, 1
      %s40 = ssub.s32 %s32, %s39
      %p41 = scmp.eq.s32.totalorder %s40, 0
      %s43 = sadd.s32 %s42, 1
      %s44 = scalar_select %p41, %s42, %s43
      %p47 = pneg %p41
      %p48 = scmp.eq.s32.totalorder %s32, 1
      %p49 = por %p47, %p48
      %p50 = scmp.ne.s32.totalorder %s42, %s45
      %p51 = scmp.eq.s32.totalorder %s32, 0
      %p52 = por %p50, %p51
      %p53 = scmp.ne.s32.totalorder %s42, %s45
      %p54 = scmp.eq.s32.totalorder %s37, 1
      %p55 = por %p53, %p54
      %p56 = scmp.ne.s32.totalorder %s45, %s46
      %p57 = scmp.eq.s32.totalorder %s37, 0
      %p58 = por %p56, %p57
      %p59 = scmp.ne.s32.totalorder %s45, %s46
      %p60 = scmp.eq.s32.totalorder %s38, 1
      %p61 = por %p59, %p60
      %p63 = scmp.ne.s32.totalorder %s46, %s62
      %p64 = scmp.eq.s32.totalorder %s38, 0
      %p65 = por %p63, %p64
      %s66 = ssub.s32 %s32, %s39
      %p67 = scmp.eq.s32.totalorder %s66, 0
      %s69 = sadd.s32 %s68, 1
      %s70 = scalar_select %p67, %s68, %s69
      %p73 = pneg %p67
      %p74 = scmp.eq.s32.totalorder %s32, 1
      %p75 = por %p73, %p74
      %p76 = scmp.ne.s32.totalorder %s68, %s71
      %p77 = scmp.eq.s32.totalorder %s32, 0
      %p78 = por %p76, %p77
      %p79 = scmp.ne.s32.totalorder %s68, %s71
      %p80 = scmp.eq.s32.totalorder %s37, 1
      %p81 = por %p79, %p80
      %p82 = scmp.ne.s32.totalorder %s71, %s72
      %p83 = scmp.eq.s32.totalorder %s37, 0
      %p84 = por %p82, %p83
      %p85 = scmp.ne.s32.totalorder %s71, %s72
      %p86 = scmp.eq.s32.totalorder %s38, 1
      %p87 = por %p85, %p86
      %p89 = scmp.ne.s32.totalorder %s72, %s88
      %p90 = scmp.eq.s32.totalorder %s38, 0
      %p91 = por %p89, %p90
      %s92 = ssub.s32 %s32, %s39
      %p93 = scmp.eq.s32.totalorder %s92, 0
      %s95 = sadd.s32 %s94, 1
      %s96 = scalar_select %p93, %s94, %s95
      %p99 = pneg %p93
      %p100 = scmp.eq.s32.totalorder %s32, 1
      %p101 = por %p99, %p100
      %p102 = scmp.ne.s32.totalorder %s94, %s97
      %p103 = scmp.eq.s32.totalorder %s32, 0
      %p104 = por %p102, %p103
      %p105 = scmp.ne.s32.totalorder %s94, %s97
      %p106 = scmp.eq.s32.totalorder %s37, 1
      %p107 = por %p105, %p106
      %p108 = scmp.ne.s32.totalorder %s97, %s98
      %p109 = scmp.eq.s32.totalorder %s37, 0
      %p110 = por %p108, %p109
      %p111 = scmp.ne.s32.totalorder %s97, %s98
      %p112 = scmp.eq.s32.totalorder %s38, 1
      %p113 = por %p111, %p112
      %p115 = scmp.ne.s32.totalorder %s98, %s114
      %p116 = scmp.eq.s32.totalorder %s38, 0
      %p117 = por %p115, %p116
      %s118 = ssub.s32 %s32, %s39
      %p119 = scmp.eq.s32.totalorder %s118, 0
      %s121 = sadd.s32 %s120, 1
      %s122 = scalar_select %p119, %s120, %s121
      %p125 = pneg %p119
      %p126 = scmp.eq.s32.totalorder %s32, 1
      %p127 = por %p125, %p126
      %p128 = scmp.ne.s32.totalorder %s120, %s123
      %p129 = scmp.eq.s32.totalorder %s32, 0
      %p130 = por %p128, %p129
      %p131 = scmp.ne.s32.totalorder %s120, %s123
      %p132 = scmp.eq.s32.totalorder %s37, 1
      %p133 = por %p131, %p132
      %p134 = scmp.ne.s32.totalorder %s123, %s124
      %p135 = scmp.eq.s32.totalorder %s37, 0
      %p136 = por %p134, %p135
      %p137 = scmp.ne.s32.totalorder %s123, %s124
      %p138 = scmp.eq.s32.totalorder %s38, 1
      %p139 = por %p137, %p138
      %p141 = scmp.ne.s32.totalorder %s124, %s140
      %p142 = scmp.eq.s32.totalorder %s38, 0
      %p143 = por %p141, %p142
      %s145 = sadd.s32 %s144, 1
      %p148 = scmp.eq.s32.totalorder %s32, 1
      %p149 = scmp.ne.s32.totalorder %s144, %s146
      %p150 = scmp.eq.s32.totalorder %s32, 0
      %p151 = por %p149, %p150
      %p152 = scmp.ne.s32.totalorder %s144, %s146
      %p153 = scmp.eq.s32.totalorder %s37, 1
      %p154 = por %p152, %p153
      %p155 = scmp.ne.s32.totalorder %s146, %s147
      %p156 = scmp.eq.s32.totalorder %s37, 0
      %p157 = por %p155, %p156
      %p158 = scmp.ne.s32.totalorder %s146, %s147
      %p159 = scmp.eq.s32.totalorder %s38, 1
      %p160 = por %p158, %p159
      %p162 = scmp.ne.s32.totalorder %s147, %s161
      %p163 = scmp.eq.s32.totalorder %s38, 0
      %p164 = por %p162, %p163
      %s166 = sadd.s32 %s165, 1
      %p169 = scmp.eq.s32.totalorder %s32, 1
      %p170 = scmp.ne.s32.totalorder %s165, %s167
      %p171 = scmp.eq.s32.totalorder %s32, 0
      %p172 = por %p170, %p171
      %p173 = scmp.ne.s32.totalorder %s165, %s167
      %p174 = scmp.eq.s32.totalorder %s37, 1
      %p175 = por %p173, %p174
      %p176 = scmp.ne.s32.totalorder %s167, %s168
      %p177 = scmp.eq.s32.totalorder %s37, 0
      %p178 = por %p176, %p177
      %p179 = scmp.ne.s32.totalorder %s167, %s168
      %p180 = scmp.eq.s32.totalorder %s38, 1
      %p181 = por %p179, %p180
      %p183 = scmp.ne.s32.totalorder %s168, %s182
      %p184 = scmp.eq.s32.totalorder %s38, 0
      %p185 = por %p183, %p184
      %s187 = sadd.s32 %s186, 1
      %p190 = scmp.eq.s32.totalorder %s32, 1
      %p191 = scmp.ne.s32.totalorder %s186, %s188
      %p192 = scmp.eq.s32.totalorder %s32, 0
      %p193 = por %p191, %p192
      %p194 = scmp.ne.s32.totalorder %s186, %s188
      %p195 = scmp.eq.s32.totalorder %s37, 1
      %p196 = por %p194, %p195
      %p197 = scmp.ne.s32.totalorder %s188, %s189
      %p198 = scmp.eq.s32.totalorder %s37, 0
      %p199 = por %p197, %p198
      %p200 = scmp.ne.s32.totalorder %s188, %s189
      %p201 = scmp.eq.s32.totalorder %s38, 1
      %p202 = por %p200, %p201
      %p204 = scmp.ne.s32.totalorder %s189, %s203
      %p205 = scmp.eq.s32.totalorder %s38, 0
      %p206 = por %p204, %p205
      %s208 = sadd.s32 %s207, 1
      %p211 = scmp.eq.s32.totalorder %s32, 1
      %p212 = scmp.ne.s32.totalorder %s207, %s209
      %p213 = scmp.eq.s32.totalorder %s32, 0
      %p214 = por %p212, %p213
      %p215 = scmp.ne.s32.totalorder %s207, %s209
      %p216 = scmp.eq.s32.totalorder %s37, 1
      %p217 = por %p215, %p216
      %p218 = scmp.ne.s32.totalorder %s209, %s210
      %p219 = scmp.eq.s32.totalorder %s37, 0
      %p220 = por %p218, %p219
      %p221 = scmp.ne.s32.totalorder %s209, %s210
      %p222 = scmp.eq.s32.totalorder %s38, 1
      %p223 = por %p221, %p222
      %p225 = scmp.ne.s32.totalorder %s210, %s224
      %p226 = scmp.eq.s32.totalorder %s38, 0
      %p227 = por %p225, %p226
      %s228 = ssub.s32 %s32, %s39
      %p229 = scmp.eq.s32.totalorder %s228, 0
      %s231 = sadd.s32 %s230, 1
      %s232 = scalar_select %p229, %s230, %s231
      %p235 = pneg %p229
      %p236 = scmp.eq.s32.totalorder %s32, 1
      %p237 = por %p235, %p236
      %p238 = scmp.ne.s32.totalorder %s230, %s233
      %p239 = scmp.eq.s32.totalorder %s32, 0
      %p240 = por %p238, %p239
      %p241 = scmp.ne.s32.totalorder %s230, %s233
      %p242 = scmp.eq.s32.totalorder %s37, 1
      %p243 = por %p241, %p242
      %p244 = scmp.ne.s32.totalorder %s233, %s234
      %p245 = scmp.eq.s32.totalorder %s37, 0
      %p246 = por %p244, %p245
      %p247 = scmp.ne.s32.totalorder %s233, %s234
      %p248 = scmp.eq.s32.totalorder %s38, 1
      %p249 = por %p247, %p248
      %p251 = scmp.ne.s32.totalorder %s234, %s250
      %p252 = scmp.eq.s32.totalorder %s38, 0
      %p253 = por %p251, %p252
      %s254 = ssub.s32 %s32, %s39
      %p255 = scmp.eq.s32.totalorder %s254, 0
      %s257 = sadd.s32 %s256, 1
      %s258 = scalar_select %p255, %s256, %s257
      %p261 = pneg %p255
      %p262 = scmp.eq.s32.totalorder %s32, 1
      %p263 = por %p261, %p262
      %p264 = scmp.ne.s32.totalorder %s256, %s259
      %p265 = scmp.eq.s32.totalorder %s32, 0
      %p266 = por %p264, %p265
      %p267 = scmp.ne.s32.totalorder %s256, %s259
      %p268 = scmp.eq.s32.totalorder %s37, 1
      %p269 = por %p267, %p268
      %p270 = scmp.ne.s32.totalorder %s259, %s260
      %p271 = scmp.eq.s32.totalorder %s37, 0
      %p272 = por %p270, %p271
      %p273 = scmp.ne.s32.totalorder %s259, %s260
      %p274 = scmp.eq.s32.totalorder %s38, 1
      %p275 = por %p273, %p274
      %p277 = scmp.ne.s32.totalorder %s260, %s276
      %p278 = scmp.eq.s32.totalorder %s38, 0
      %p279 = por %p277, %p278
      %p280 = scmp.le.s32.totalorder 1, %s32
      %p281 = scmp.lt.s32.totalorder %s32, 3
      %p282 = pnand %p280, %p281
      %p283 = pneg %p282
      // Predicated region
      $region9: #{tpu_custom_call.1} parent=5 // pred_check
        _
      $region10: #{tpu_custom_call.1} parent=5 // pred_check_branch
        %285 = sbr.rel (%p282) target = $region12
      $region11: #{tpu_custom_call.1} parent=5 // pred_region
        %s286 = ssub.s32 %s32, 1
        // Predicated region
        $region13: #{tpu_custom_call.1} parent=11 // pred_check
          %p287 = pneg %p157
        $region14: #{tpu_custom_call.1} parent=11 // pred_check_branch
          %289 = sbr.rel (%p287) target = $region16
        $region15: #{tpu_custom_call.1} parent=11 // pred_region
          %s291 = ssub.s32 4096, 4096
          %292 = vsyncadd [#allocation9], %s291
          %s293 = sshll.u32 [#allocation10], 4
          %s294 = int_to_ptr.vmem [resolvable:$true] %s293
          %299 = dma.hbm_to_vmem [thread:$0]  %s4, 4096, %s294, [#allocation9], 64, 64, 4
        $region16: #{tpu_custom_call.1} parent=11 // pred_fallthru
          _
        // Predicated region
        $region17: #{tpu_custom_call.1} parent=11 // pred_check
          %p300 = pneg %p178
        $region18: #{tpu_custom_call.1} parent=11 // pred_check_branch
          %302 = sbr.rel (%p300) target = $region20
        $region19: #{tpu_custom_call.1} parent=11 // pred_region
          %s304 = ssub.s32 2048, 2048
          %305 = vsyncadd [#allocation12], %s304
          %s306 = sshll.u32 [#allocation11], 4
          %s307 = int_to_ptr.vmem [resolvable:$true] %s306
          %312 = dma.hbm_to_vmem [thread:$0]  %s5, 2048, %s307, [#allocation12], 128, 128, 8
        $region20: #{tpu_custom_call.1} parent=11 // pred_fallthru
          _
        // Predicated region
        $region21: #{tpu_custom_call.1} parent=11 // pred_check
          %p313 = pneg %p199
        $region22: #{tpu_custom_call.1} parent=11 // pred_check_branch
          %315 = sbr.rel (%p313) target = $region24
        $region23: #{tpu_custom_call.1} parent=11 // pred_region
          _
        $region24: #{tpu_custom_call.1} parent=11 // pred_fallthru
          _
        // Predicated region
        $region25: #{tpu_custom_call.1} parent=11 // pred_check
          %p316 = pneg %p220
        $region26: #{tpu_custom_call.1} parent=11 // pred_check_branch
          %318 = sbr.rel (%p316) target = $region28
        $region27: #{tpu_custom_call.1} parent=11 // pred_region
          _
        $region28: #{tpu_custom_call.1} parent=11 // pred_fallthru
          _
      $region12: #{tpu_custom_call.1} parent=5 // pred_fallthru
        _
      %p319 = scmp.lt.s32.totalorder %s32, 2
      // Predicated region
      $region29: #{tpu_custom_call.1} parent=5 // pred_check
        %p320 = pneg %p319
      $region30: #{tpu_custom_call.1} parent=5 // pred_check_branch
        %322 = sbr.rel (%p320) target = $region32
      $region31: #{tpu_custom_call.1} parent=5 // pred_region
        // Predicated region
        $region33: #{tpu_custom_call.1} parent=31 // pred_check
          %p323 = pneg %p52
        $region34: #{tpu_custom_call.1} parent=31 // pred_check_branch
          %325 = sbr.rel (%p323) target = $region36
        $region35: #{tpu_custom_call.1} parent=31 // pred_region
          %s326 = sand.u32 %s42, 1
          %s327 = scalar_lea.sflag [#allocation3], %s326
          %s328 = sand.u32 %s42, 1
          %s329 = smul.addr %s328, 4
          %s330 = scalar_lea.vmem [#allocation2], %s329
          %s332 = ssub.s32 64, 64
          %333 = vsyncadd %s327, %s332
          %s334 = smul.addr %s32, 64
          %s335 = scalar_lea.hbm %s0, %s334
          %s337 = sshll.u32 %s330, 4
          %s338 = int_to_ptr.vmem [resolvable:$true] %s337
          %340 = dma.hbm_to_vmem [thread:$0]  %s335, 64, %s338, %s327
        $region36: #{tpu_custom_call.1} parent=31 // pred_fallthru
          _
        // Predicated region
        $region37: #{tpu_custom_call.1} parent=31 // pred_check
          %p341 = pneg %p78
        $region38: #{tpu_custom_call.1} parent=31 // pred_check_branch
          %343 = sbr.rel (%p341) target = $region40
        $region39: #{tpu_custom_call.1} parent=31 // pred_region
          %s344 = sand.u32 %s32, 1
          %s345 = scalar_lea.sflag [#allocation6], %s344
          %s346 = sand.u32 %s68, 1
          %s347 = smul.addr %s346, 4
          %s348 = scalar_lea.vmem [#allocation5], %s347
          %s350 = ssub.s32 64, 64
          %351 = vsyncadd %s345, %s350
          %s352 = smul.addr %s32, 64
          %s353 = scalar_lea.hbm %s1, %s352
          %s355 = sshll.u32 %s348, 4
          %s356 = int_to_ptr.vmem [resolvable:$true] %s355
          %358 = dma.hbm_to_vmem [thread:$0]  %s353, 64, %s356, %s345
        $region40: #{tpu_custom_call.1} parent=31 // pred_fallthru
          _
        // Predicated region
        $region41: #{tpu_custom_call.1} parent=31 // pred_check
          %p359 = pneg %p104
        $region42: #{tpu_custom_call.1} parent=31 // pred_check_branch
          %361 = sbr.rel (%p359) target = $region44
        $region43: #{tpu_custom_call.1} parent=31 // pred_region
          %s362 = sand.u32 %s32, 1
          %s363 = scalar_lea.sflag [#allocation6], %s362
          %s364 = sand.u32 %s94, 1
          %s365 = smul.addr %s364, 4
          %s366 = scalar_lea.vmem [#allocation7], %s365
          %s368 = ssub.s32 64, 64
          %369 = vsyncadd %s363, %s368
          %s370 = smul.addr %s32, 64
          %s371 = scalar_lea.hbm %s2, %s370
          %s373 = sshll.u32 %s366, 4
          %s374 = int_to_ptr.vmem [resolvable:$true] %s373
          %376 = dma.hbm_to_vmem [thread:$0]  %s371, 64, %s374, %s363
        $region44: #{tpu_custom_call.1} parent=31 // pred_fallthru
          _
        // Predicated region
        $region45: #{tpu_custom_call.1} parent=31 // pred_check
          %p377 = pneg %p130
        $region46: #{tpu_custom_call.1} parent=31 // pred_check_branch
          %379 = sbr.rel (%p377) target = $region48
        $region47: #{tpu_custom_call.1} parent=31 // pred_region
          %s380 = sand.u32 %s32, 1
          %s381 = scalar_lea.sflag [#allocation9], %s380
          %s382 = sand.u32 %s120, 1
          %s383 = smul.addr %s382, 8
          %s384 = scalar_lea.vmem [#allocation8], %s383
          %s386 = ssub.s32 128, 128
          %387 = vsyncadd %s381, %s386
          %s388 = smul.addr %s32, 64
          %s389 = scalar_lea.hbm %s3, %s388
          %s390 = sshll.u32 %s384, 4
          %s391 = int_to_ptr.vmem [resolvable:$true] %s390
          %396 = dma.hbm_to_vmem [thread:$0]  %s389, 128, %s391, %s381, 128, 64, 4
        $region48: #{tpu_custom_call.1} parent=31 // pred_fallthru
          _
      $region32: #{tpu_custom_call.1} parent=5 // pred_fallthru
        _
      %p397 = scmp.le.s32.totalorder 1, %s32
      %p398 = scmp.lt.s32.totalorder %s32, 3
      %p399 = pnand %p397, %p398
      %p400 = pneg %p399
      // Predicated region
      $region49: #{tpu_custom_call.1} parent=5 // pred_check
        _
      $region50: #{tpu_custom_call.1} parent=5 // pred_check_branch
        %402 = sbr.rel (%p399) target = $region52
      $region51: #{tpu_custom_call.1} parent=5 // pred_region
        %s403 = ssub.s32 %s32, 1
        %s404 = sand.u32 %s45, 1
        %s405 = scalar_lea.sflag [#allocation3], %s404
        %s406 = sand.u32 %s45, 1
        %s407 = smul.addr %s406, 4
        %s408 = scalar_lea.vmem [#allocation2], %s407
        // Predicated region
        $region53: #{tpu_custom_call.1} parent=51 // pred_check
          %p409 = pneg %p58
        $region54: #{tpu_custom_call.1} parent=51 // pred_check_branch
          %411 = sbr.rel (%p409) target = $region56
        $region55: #{tpu_custom_call.1} parent=51 // pred_region
          %412 = dma.done %s405, 64
        $region56: #{tpu_custom_call.1} parent=51 // pred_fallthru
          _
        %s413 = sand.u32 %s37, 1
        %s414 = scalar_lea.sflag [#allocation6], %s413
        %s415 = sand.u32 %s71, 1
        %s416 = smul.addr %s415, 4
        %s417 = scalar_lea.vmem [#allocation5], %s416
        // Predicated region
        $region57: #{tpu_custom_call.1} parent=51 // pred_check
          %p418 = pneg %p84
        $region58: #{tpu_custom_call.1} parent=51 // pred_check_branch
          %420 = sbr.rel (%p418) target = $region60
        $region59: #{tpu_custom_call.1} parent=51 // pred_region
          %421 = dma.done %s414, 64
        $region60: #{tpu_custom_call.1} parent=51 // pred_fallthru
          _
        %s422 = sand.u32 %s37, 1
        %s423 = scalar_lea.sflag [#allocation6], %s422
        %s424 = sand.u32 %s97, 1
        %s425 = smul.addr %s424, 4
        %s426 = scalar_lea.vmem [#allocation7], %s425
        // Predicated region
        $region61: #{tpu_custom_call.1} parent=51 // pred_check
          %p427 = pneg %p110
        $region62: #{tpu_custom_call.1} parent=51 // pred_check_branch
          %429 = sbr.rel (%p427) target = $region64
        $region63: #{tpu_custom_call.1} parent=51 // pred_region
          %430 = dma.done %s423, 64
        $region64: #{tpu_custom_call.1} parent=51 // pred_fallthru
          _
        %s431 = sand.u32 %s37, 1
        %s432 = scalar_lea.sflag [#allocation9], %s431
        %s433 = sand.u32 %s123, 1
        %s434 = smul.addr %s433, 8
        %s435 = scalar_lea.vmem [#allocation8], %s434
        // Predicated region
        $region65: #{tpu_custom_call.1} parent=51 // pred_check
          %p436 = pneg %p136
        $region66: #{tpu_custom_call.1} parent=51 // pred_check_branch
          %438 = sbr.rel (%p436) target = $region68
        $region67: #{tpu_custom_call.1} parent=51 // pred_region
          %439 = dma.done %s432, 128
        $region68: #{tpu_custom_call.1} parent=51 // pred_fallthru
          _
        // Predicated region
        $region69: #{tpu_custom_call.1} parent=51 // pred_check
          %p440 = pneg %p157
        $region70: #{tpu_custom_call.1} parent=51 // pred_check_branch
          %442 = sbr.rel (%p440) target = $region72
        $region71: #{tpu_custom_call.1} parent=51 // pred_region
          %443 = dma.done [#allocation9], 4096
        $region72: #{tpu_custom_call.1} parent=51 // pred_fallthru
          _
        // Predicated region
        $region73: #{tpu_custom_call.1} parent=51 // pred_check
          %p444 = pneg %p178
        $region74: #{tpu_custom_call.1} parent=51 // pred_check_branch
          %446 = sbr.rel (%p444) target = $region76
        $region75: #{tpu_custom_call.1} parent=51 // pred_region
          %447 = dma.done [#allocation12], 2048
        $region76: #{tpu_custom_call.1} parent=51 // pred_fallthru
          _
        %s448 = sand.u32 %s45, 1
        %s449 = scalar_lea.sflag [#allocation3], %s448
        %s450 = sand.u32 %s45, 1
        %s451 = smul.addr %s450, 4
        %s452 = scalar_lea.vmem [#allocation2], %s451
        %p453 = pneg %p58
        %p454 = pneg %p55
        %s455 = sand.u32 %s37, 1
        %s456 = scalar_lea.sflag [#allocation6], %s455
        %s457 = sand.u32 %s71, 1
        %s458 = smul.addr %s457, 4
        %s459 = scalar_lea.vmem [#allocation5], %s458
        %p460 = pneg %p84
        %p461 = pneg %p81
        %s462 = sand.u32 %s37, 1
        %s463 = scalar_lea.sflag [#allocation6], %s462
        %s464 = sand.u32 %s97, 1
        %s465 = smul.addr %s464, 4
        %s466 = scalar_lea.vmem [#allocation7], %s465
        %p467 = pneg %p110
        %p468 = pneg %p107
        %s469 = sand.u32 %s37, 1
        %s470 = scalar_lea.sflag [#allocation9], %s469
        %s471 = sand.u32 %s123, 1
        %s472 = smul.addr %s471, 8
        %s473 = scalar_lea.vmem [#allocation8], %s472
        %p474 = pneg %p136
        %p475 = pneg %p133
        %p476 = pneg %p157
        %p477 = pneg %p154
        %p478 = pneg %p178
        %p479 = pneg %p175
        %p480 = pneg %p199
        %p481 = pneg %p196
        %p482 = pneg %p220
        %p483 = pneg %p217
        %p484 = pneg %p246
        %p485 = pneg %p243
        %s486 = sand.u32 %s233, 1
        %s487 = scalar_lea.sflag [#allocation4], %s486
        %s488 = sand.u32 %s233, 1
        %s489 = smul.addr %s488, 8
        %s490 = scalar_lea.vmem [#allocation13], %s489
        %p491 = pneg %p272
        %p492 = pneg %p269
        %s493 = sand.u32 %s259, 1
        %s494 = scalar_lea.sflag [#allocation15], %s493
        %s495 = sand.u32 %s259, 1
        %s496 = smul.addr %s495, 8
        %s497 = scalar_lea.vmem [#allocation14], %s496
        %v499 = vld [vmem:[%s408] sm:$0xf]
        %v500 = vld [vmem:[#allocation10] sm:$0xf]
        %v501 = vld [vmem:[#allocation10 + $0x4] sm:$0xf]
        %v502 = vld [vmem:[#allocation10 + $0x8] sm:$0xf]
        %v503 = vld [vmem:[#allocation10 + $0xc] sm:$0xf]
        %v504 = vld [vmem:[#allocation10 + $0x10] sm:$0xf]
        %v505 = vld [vmem:[#allocation10 + $0x14] sm:$0xf]
        %v506 = vld [vmem:[#allocation10 + $0x18] sm:$0xf]
        %v507 = vld [vmem:[#allocation10 + $0x1c] sm:$0xf]
        %v508 = vld [vmem:[#allocation10 + $0x20] sm:$0xf]
        %v509 = vld [vmem:[#allocation10 + $0x24] sm:$0xf]
        %v510 = vld [vmem:[#allocation10 + $0x28] sm:$0xf]
        %v511 = vld [vmem:[#allocation10 + $0x2c] sm:$0xf]
        %v512 = vld [vmem:[#allocation10 + $0x30] sm:$0xf]
        %v513 = vld [vmem:[#allocation10 + $0x34] sm:$0xf]
        %v514 = vld [vmem:[#allocation10 + $0x38] sm:$0xf]
        %v515 = vld [vmem:[#allocation10 + $0x3c] sm:$0xf]
        %v532 = vunpack.c.l.b16 %v500
        %v533 = vunpack.c.l.b16 %v501
        %v534 = vunpack.c.l.b16 %v502
        %v535 = vunpack.c.l.b16 %v503
        %v536 = vunpack.c.l.b16 %v504
        %v537 = vunpack.c.l.b16 %v505
        %v538 = vunpack.c.l.b16 %v506
        %v539 = vunpack.c.l.b16 %v507
        %v540 = vunpack.c.l.b16 %v508
        %v541 = vunpack.c.l.b16 %v509
        %v542 = vunpack.c.l.b16 %v510
        %v543 = vunpack.c.l.b16 %v511
        %v544 = vunpack.c.l.b16 %v512
        %v545 = vunpack.c.l.b16 %v513
        %v546 = vunpack.c.l.b16 %v514
        %v547 = vunpack.c.l.b16 %v515
        %v548 = vpack.c.b16 %v533, %v532
        %v549 = vpack.c.b16 %v535, %v534
        %v550 = vpack.c.b16 %v537, %v536
        %v551 = vpack.c.b16 %v539, %v538
        %v552 = vpack.c.b16 %v541, %v540
        %v553 = vpack.c.b16 %v543, %v542
        %v554 = vpack.c.b16 %v545, %v544
        %v555 = vpack.c.b16 %v547, %v546
        %564 = vmatprep.subr.bf16.mxu0 0
        %565 = vmatpush1.bf16.msra.mxu0 %v548
        %566 = vmatprep.subr.bf16.mxu0 0
        %567 = vmatpush1.bf16.msra.mxu0 %v549
        %568 = vmatprep.subr.bf16.mxu0 0
        %569 = vmatpush1.bf16.msra.mxu0 %v550
        %570 = vmatprep.subr.bf16.mxu0 0
        %571 = vmatpush1.bf16.msra.mxu0 %v551
        %572 = vmatprep.subr.bf16.mxu0 0
        %573 = vmatpush1.bf16.msra.mxu0 %v552
        %574 = vmatprep.subr.bf16.mxu0 0
        %575 = vmatpush1.bf16.msra.mxu0 %v553
        %576 = vmatprep.subr.bf16.mxu0 0
        %577 = vmatpush1.bf16.msra.mxu0 %v554
        %578 = vmatprep.subr.bf16.mxu0 0
        %579 = vmatpush1.bf16.msra.mxu0 %v555
        %580 = vmatprep.subr.bf16.mxu0 0
        %581 = vmatpush1.bf16.msra.mxu0 0
        %582 = vmatprep.subr.bf16.mxu0 0
        %583 = vmatpush1.bf16.msra.mxu0 0
        %584 = vmatprep.subr.bf16.mxu0 0
        %585 = vmatpush1.bf16.msra.mxu0 0
        %586 = vmatprep.subr.bf16.mxu0 0
        %587 = vmatpush1.bf16.msra.mxu0 0
        %588 = vmatprep.subr.bf16.mxu0 0
        %589 = vmatpush1.bf16.msra.mxu0 0
        %590 = vmatprep.subr.bf16.mxu0 0
        %591 = vmatpush1.bf16.msra.mxu0 0
        %592 = vmatprep.subr.bf16.mxu0 0
        %593 = vmatpush1.bf16.msra.mxu0 0
        %594 = vmatprep.subr.bf16.mxu0 0
        %595 = vmatpush1.bf16.msra.mxu0 0
        %596 = vmatprep.mubr.bf16.mxu0 0
        %597 = vmatmul.mubr.bf16.gmra.mrb[0].mxu0 %v499
        %v598 = vpop.f32.mrb[0].mxu0
        %v599 = vadd.f32 0.0, %v598
        %v600 = vpop.f32.mrb[0].mxu0
        %v601 = vpop.f32.mrb[0].mxu0
        %v602 = vpop.f32.mrb[0].mxu0
        %603 = vdwg.mxu0
        %v604 = vmul.f32 %v599, 0.125
        %v605 = vld [vmem:[%s417] sm:$0xf]
        %s606 = scalar_lea.vmem [#allocation10], 64
        %v607 = vld [vmem:[%s606] sm:$0xf]
        %v608 = vld [vmem:[%s606 + $0x4] sm:$0xf]
        %v609 = vld [vmem:[%s606 + $0x8] sm:$0xf]
        %v610 = vld [vmem:[%s606 + $0xc] sm:$0xf]
        %v611 = vld [vmem:[%s606 + $0x10] sm:$0xf]
        %v612 = vld [vmem:[%s606 + $0x14] sm:$0xf]
        %v613 = vld [vmem:[%s606 + $0x18] sm:$0xf]
        %v614 = vld [vmem:[%s606 + $0x1c] sm:$0xf]
        %v615 = vld [vmem:[%s606 + $0x20] sm:$0xf]
        %v616 = vld [vmem:[%s606 + $0x24] sm:$0xf]
        %v617 = vld [vmem:[%s606 + $0x28] sm:$0xf]
        %v618 = vld [vmem:[%s606 + $0x2c] sm:$0xf]
        %v619 = vld [vmem:[%s606 + $0x30] sm:$0xf]
        %v620 = vld [vmem:[%s606 + $0x34] sm:$0xf]
        %v621 = vld [vmem:[%s606 + $0x38] sm:$0xf]
        %v622 = vld [vmem:[%s606 + $0x3c] sm:$0xf]
        %v639 = vunpack.c.l.b16 %v607
        %v640 = vunpack.c.l.b16 %v608
        %v641 = vunpack.c.l.b16 %v609
        %v642 = vunpack.c.l.b16 %v610
        %v643 = vunpack.c.l.b16 %v611
        %v644 = vunpack.c.l.b16 %v612
        %v645 = vunpack.c.l.b16 %v613
        %v646 = vunpack.c.l.b16 %v614
        %v647 = vunpack.c.l.b16 %v615
        %v648 = vunpack.c.l.b16 %v616
        %v649 = vunpack.c.l.b16 %v617
        %v650 = vunpack.c.l.b16 %v618
        %v651 = vunpack.c.l.b16 %v619
        %v652 = vunpack.c.l.b16 %v620
        %v653 = vunpack.c.l.b16 %v621
        %v654 = vunpack.c.l.b16 %v622
        %v655 = vpack.c.b16 %v640, %v639
        %v656 = vpack.c.b16 %v642, %v641
        %v657 = vpack.c.b16 %v644, %v643
        %v658 = vpack.c.b16 %v646, %v645
        %v659 = vpack.c.b16 %v648, %v647
        %v660 = vpack.c.b16 %v650, %v649
        %v661 = vpack.c.b16 %v652, %v651
        %v662 = vpack.c.b16 %v654, %v653
        %671 = vmatprep.subr.bf16.mxu0 0
        %672 = vmatpush1.bf16.msra.mxu0 %v655
        %673 = vmatprep.subr.bf16.mxu0 0
        %674 = vmatpush1.bf16.msra.mxu0 %v656
        %675 = vmatprep.subr.bf16.mxu0 0
        %676 = vmatpush1.bf16.msra.mxu0 %v657
        %677 = vmatprep.subr.bf16.mxu0 0
        %678 = vmatpush1.bf16.msra.mxu0 %v658
        %679 = vmatprep.subr.bf16.mxu0 0
        %680 = vmatpush1.bf16.msra.mxu0 %v659
        %681 = vmatprep.subr.bf16.mxu0 0
        %682 = vmatpush1.bf16.msra.mxu0 %v660
        %683 = vmatprep.subr.bf16.mxu0 0
        %684 = vmatpush1.bf16.msra.mxu0 %v661
        %685 = vmatprep.subr.bf16.mxu0 0
        %686 = vmatpush1.bf16.msra.mxu0 %v662
        %687 = vmatprep.subr.bf16.mxu0 0
        %688 = vmatpush1.bf16.msra.mxu0 0
        %689 = vmatprep.subr.bf16.mxu0 0
        %690 = vmatpush1.bf16.msra.mxu0 0
        %691 = vmatprep.subr.bf16.mxu0 0
        %692 = vmatpush1.bf16.msra.mxu0 0
        %693 = vmatprep.subr.bf16.mxu0 0
        %694 = vmatpush1.bf16.msra.mxu0 0
        %695 = vmatprep.subr.bf16.mxu0 0
        %696 = vmatpush1.bf16.msra.mxu0 0
        %697 = vmatprep.subr.bf16.mxu0 0
        %698 = vmatpush1.bf16.msra.mxu0 0
        %699 = vmatprep.subr.bf16.mxu0 0
        %700 = vmatpush1.bf16.msra.mxu0 0
        %701 = vmatprep.subr.bf16.mxu0 0
        %702 = vmatpush1.bf16.msra.mxu0 0
        %703 = vmatprep.mubr.bf16.mxu0 0
        %704 = vmatmul.mubr.bf16.gmra.mrb[0].mxu0 %v605
        %v705 = vpop.f32.mrb[0].mxu0
        %v706 = vadd.f32 0.0, %v705
        %v707 = vpop.f32.mrb[0].mxu0
        %v708 = vpop.f32.mrb[0].mxu0
        %v709 = vpop.f32.mrb[0].mxu0
        %710 = vdwg.mxu0
        %v711 = vld [vmem:[%s426] sm:$0xf]
        %s712 = scalar_lea.vmem [#allocation10], 128
        %v713 = vld [vmem:[%s712] sm:$0xf]
        %v714 = vld [vmem:[%s712 + $0x4] sm:$0xf]
        %v715 = vld [vmem:[%s712 + $0x8] sm:$0xf]
        %v716 = vld [vmem:[%s712 + $0xc] sm:$0xf]
        %v717 = vld [vmem:[%s712 + $0x10] sm:$0xf]
        %v718 = vld [vmem:[%s712 + $0x14] sm:$0xf]
        %v719 = vld [vmem:[%s712 + $0x18] sm:$0xf]
        %v720 = vld [vmem:[%s712 + $0x1c] sm:$0xf]
        %v721 = vld [vmem:[%s712 + $0x20] sm:$0xf]
        %v722 = vld [vmem:[%s712 + $0x24] sm:$0xf]
        %v723 = vld [vmem:[%s712 + $0x28] sm:$0xf]
        %v724 = vld [vmem:[%s712 + $0x2c] sm:$0xf]
        %v725 = vld [vmem:[%s712 + $0x30] sm:$0xf]
        %v726 = vld [vmem:[%s712 + $0x34] sm:$0xf]
        %v727 = vld [vmem:[%s712 + $0x38] sm:$0xf]
        %v728 = vld [vmem:[%s712 + $0x3c] sm:$0xf]
        %v745 = vunpack.c.l.b16 %v713
        %v746 = vunpack.c.l.b16 %v714
        %v747 = vunpack.c.l.b16 %v715
        %v748 = vunpack.c.l.b16 %v716
        %v749 = vunpack.c.l.b16 %v717
        %v750 = vunpack.c.l.b16 %v718
        %v751 = vunpack.c.l.b16 %v719
        %v752 = vunpack.c.l.b16 %v720
        %v753 = vunpack.c.l.b16 %v721
        %v754 = vunpack.c.l.b16 %v722
        %v755 = vunpack.c.l.b16 %v723
        %v756 = vunpack.c.l.b16 %v724
        %v757 = vunpack.c.l.b16 %v725
        %v758 = vunpack.c.l.b16 %v726
        %v759 = vunpack.c.l.b16 %v727
        %v760 = vunpack.c.l.b16 %v728
        %v761 = vpack.c.b16 %v746, %v745
        %v762 = vpack.c.b16 %v748, %v747
        %v763 = vpack.c.b16 %v750, %v749
        %v764 = vpack.c.b16 %v752, %v751
        %v765 = vpack.c.b16 %v754, %v753
        %v766 = vpack.c.b16 %v756, %v755
        %v767 = vpack.c.b16 %v758, %v757
        %v768 = vpack.c.b16 %v760, %v759
        %777 = vmatprep.subr.bf16.mxu0 0
        %778 = vmatpush1.bf16.msra.mxu0 %v761
        %779 = vmatprep.subr.bf16.mxu0 0
        %780 = vmatpush1.bf16.msra.mxu0 %v762
        %781 = vmatprep.subr.bf16.mxu0 0
        %782 = vmatpush1.bf16.msra.mxu0 %v763
        %783 = vmatprep.subr.bf16.mxu0 0
        %784 = vmatpush1.bf16.msra.mxu0 %v764
        %785 = vmatprep.subr.bf16.mxu0 0
        %786 = vmatpush1.bf16.msra.mxu0 %v765
        %787 = vmatprep.subr.bf16.mxu0 0
        %788 = vmatpush1.bf16.msra.mxu0 %v766
        %789 = vmatprep.subr.bf16.mxu0 0
        %790 = vmatpush1.bf16.msra.mxu0 %v767
        %791 = vmatprep.subr.bf16.mxu0 0
        %792 = vmatpush1.bf16.msra.mxu0 %v768
        %793 = vmatprep.subr.bf16.mxu0 0
        %794 = vmatpush1.bf16.msra.mxu0 0
        %795 = vmatprep.subr.bf16.mxu0 0
        %796 = vmatpush1.bf16.msra.mxu0 0
        %797 = vmatprep.subr.bf16.mxu0 0
        %798 = vmatpush1.bf16.msra.mxu0 0
        %799 = vmatprep.subr.bf16.mxu0 0
        %800 = vmatpush1.bf16.msra.mxu0 0
        %801 = vmatprep.subr.bf16.mxu0 0
        %802 = vmatpush1.bf16.msra.mxu0 0
        %803 = vmatprep.subr.bf16.mxu0 0
        %804 = vmatpush1.bf16.msra.mxu0 0
        %805 = vmatprep.subr.bf16.mxu0 0
        %806 = vmatpush1.bf16.msra.mxu0 0
        %807 = vmatprep.subr.bf16.mxu0 0
        %808 = vmatpush1.bf16.msra.mxu0 0
        %809 = vmatprep.mubr.bf16.mxu0 0
        %810 = vmatmul.mubr.bf16.gmra.mrb[0].mxu0 %v711
        %v811 = vpop.f32.mrb[0].mxu0
        %v812 = vadd.f32 0.0, %v811
        %v813 = vpop.f32.mrb[0].mxu0
        %v814 = vpop.f32.mrb[0].mxu0
        %v815 = vpop.f32.mrb[0].mxu0
        %816 = vdwg.mxu0
        %v817 = vld [vmem:[%s435] sm:$0xf]
        %v818 = vld [vmem:[%s435 + $0x4] sm:$0x1]
        %s819 = scalar_lea.vmem [#allocation10], 192
        %v820 = vld [vmem:[%s819] sm:$0xf]
        %v821 = vld [vmem:[%s819 + $0x4] sm:$0xf]
        %v822 = vld [vmem:[%s819 + $0x8] sm:$0xf]
        %v823 = vld [vmem:[%s819 + $0xc] sm:$0xf]
        %v824 = vld [vmem:[%s819 + $0x10] sm:$0xf]
        %v825 = vld [vmem:[%s819 + $0x14] sm:$0xf]
        %v826 = vld [vmem:[%s819 + $0x18] sm:$0xf]
        %v827 = vld [vmem:[%s819 + $0x1c] sm:$0xf]
        %v828 = vld [vmem:[%s819 + $0x20] sm:$0xf]
        %v829 = vld [vmem:[%s819 + $0x24] sm:$0xf]
        %v830 = vld [vmem:[%s819 + $0x28] sm:$0xf]
        %v831 = vld [vmem:[%s819 + $0x2c] sm:$0xf]
        %v832 = vld [vmem:[%s819 + $0x30] sm:$0xf]
        %v833 = vld [vmem:[%s819 + $0x34] sm:$0xf]
        %v834 = vld [vmem:[%s819 + $0x38] sm:$0xf]
        %v835 = vld [vmem:[%s819 + $0x3c] sm:$0xf]
        %v838 = vunpack.c.l.b16 %v817
        %v839 = vunpack.c.l.b16 %v818
        %v840 = vpack.c.b16 %v839, %v838
        %v858 = vunpack.c.l.b16 %v820
        %v859 = vunpack.c.l.b16 %v821
        %v860 = vunpack.c.l.b16 %v822
        %v861 = vunpack.c.l.b16 %v823
        %v862 = vunpack.c.l.b16 %v824
        %v863 = vunpack.c.l.b16 %v825
        %v864 = vunpack.c.l.b16 %v826
        %v865 = vunpack.c.l.b16 %v827
        %v866 = vunpack.c.l.b16 %v828
        %v867 = vunpack.c.l.b16 %v829
        %v868 = vunpack.c.l.b16 %v830
        %v869 = vunpack.c.l.b16 %v831
        %v870 = vunpack.c.l.b16 %v832
        %v871 = vunpack.c.l.b16 %v833
        %v872 = vunpack.c.l.b16 %v834
        %v873 = vunpack.c.l.b16 %v835
        %v874 = vpack.c.b16 %v859, %v858
        %v875 = vpack.c.b16 %v861, %v860
        %v876 = vpack.c.b16 %v863, %v862
        %v877 = vpack.c.b16 %v865, %v864
        %v878 = vpack.c.b16 %v867, %v866
        %v879 = vpack.c.b16 %v869, %v868
        %v880 = vpack.c.b16 %v871, %v870
        %v881 = vpack.c.b16 %v873, %v872
        %890 = vmatprep.subr.bf16.mxu0 0
        %891 = vmatpush1.bf16.msra.mxu0 %v874
        %892 = vmatprep.subr.bf16.mxu0 0
        %893 = vmatpush1.bf16.msra.mxu0 %v875
        %894 = vmatprep.subr.bf16.mxu0 0
        %895 = vmatpush1.bf16.msra.mxu0 %v876
        %896 = vmatprep.subr.bf16.mxu0 0
        %897 = vmatpush1.bf16.msra.mxu0 %v877
        %898 = vmatprep.subr.bf16.mxu0 0
        %899 = vmatpush1.bf16.msra.mxu0 %v878
        %900 = vmatprep.subr.bf16.mxu0 0
        %901 = vmatpush1.bf16.msra.mxu0 %v879
        %902 = vmatprep.subr.bf16.mxu0 0
        %903 = vmatpush1.bf16.msra.mxu0 %v880
        %904 = vmatprep.subr.bf16.mxu0 0
        %905 = vmatpush1.bf16.msra.mxu0 %v881
        %906 = vmatprep.subr.bf16.mxu0 0
        %907 = vmatpush1.bf16.msra.mxu0 0
        %908 = vmatprep.subr.bf16.mxu0 0
        %909 = vmatpush1.bf16.msra.mxu0 0
        %910 = vmatprep.subr.bf16.mxu0 0
        %911 = vmatpush1.bf16.msra.mxu0 0
        %912 = vmatprep.subr.bf16.mxu0 0
        %913 = vmatpush1.bf16.msra.mxu0 0
        %914 = vmatprep.subr.bf16.mxu0 0
        %915 = vmatpush1.bf16.msra.mxu0 0
        %916 = vmatprep.subr.bf16.mxu0 0
        %917 = vmatpush1.bf16.msra.mxu0 0
        %918 = vmatprep.subr.bf16.mxu0 0
        %919 = vmatpush1.bf16.msra.mxu0 0
        %920 = vmatprep.subr.bf16.mxu0 0
        %921 = vmatpush1.bf16.msra.mxu0 0
        %922 = vmatprep.mubr.bf16.mxu0 0
        %923 = vmatmul.mubr.bf16.gmra.mrb[0].mxu0 %v840
        %v924 = vpop.f32.mrb[0].mxu0
        %v925 = vadd.f32 0.0, %v924
        %v926 = vpop.f32.mrb[0].mxu0
        %v927 = vpop.f32.mrb[0].mxu0
        %v928 = vadd.f32 0.0, %v927
        %v929 = vpop.f32.mrb[0].mxu0
        %930 = vdwg.mxu0
        %v931 = vld [vmem:[%s6] sm:$0x1]
        %v932 = vlaneseq
        %v933 = vshrl.u32 %v932, 7
        %v934 = vsub.s32 0, %v933
        %v935 = vrot.slane %v931, %v934
        %v936 = vadd.f32 %v604, %v935
        %v937 = vld [vmem:[%s6 + $0x1] sm:$0x1]
        %v938 = vlaneseq
        %v939 = vshrl.u32 %v938, 7
        %v940 = vsub.s32 0, %v939
        %v941 = vrot.slane %v937, %v940
        %v942 = vadd.f32 %v604, %v941
        %v943 = vld [vmem:[%s7] sm:$0xff]
        %vm944 = vcmask 523264
        %v946 = vsel %vm944, %v942, 0
        %v949 = vsel %vm944, %v925, 0
        %v952 = vsel %vm944, %v928, 0
        %954 = vmatprep.subr.mxu0 0.0
        %955 = vmatpush1.xpose.msra.mxu0 %v949
        %956 = vmatprep.subr.mxu0 0.0
        %957 = vmatpush1.xpose.msra.mxu0 %v952
        %958 = vmatprep.subr.mxu0 0.0
        %959 = vmatpush1.xpose.msra.mxu0 0.0
        %960 = vmatprep.subr.mxu0 0.0
        %961 = vmatpush1.xpose.msra.mxu0 0.0
        %962 = vmatprep.subr.mxu0 0.0
        %963 = vmatpush1.xpose.msra.mxu0 0.0
        %964 = vmatprep.subr.mxu0 0.0
        %965 = vmatpush1.xpose.msra.mxu0 0.0
        %966 = vmatprep.subr.mxu0 0.0
        %967 = vmatpush1.xpose.msra.mxu0 0.0
        %968 = vmatprep.subr.mxu0 0.0
        %969 = vmatpush1.xpose.msra.mxu0 0.0
        %970 = vmatprep.subr.mxu0 0.0
        %971 = vmatpush1.xpose.msra.mxu0 0.0
        %972 = vmatprep.subr.mxu0 0.0
        %973 = vmatpush1.xpose.msra.mxu0 0.0
        %974 = vmatprep.subr.mxu0 0.0
        %975 = vmatpush1.xpose.msra.mxu0 0.0
        %976 = vmatprep.subr.mxu0 0.0
        %977 = vmatpush1.xpose.msra.mxu0 0.0
        %978 = vmatprep.subr.mxu0 0.0
        %979 = vmatpush1.xpose.msra.mxu0 0.0
        %980 = vmatprep.subr.mxu0 0.0
        %981 = vmatpush1.xpose.msra.mxu0 0.0
        %982 = vmatprep.subr.mxu0 0.0
        %983 = vmatpush1.xpose.msra.mxu0 0.0
        %984 = vmatprep.subr.mxu0 0.0
        %985 = vmatpush1.xpose.msra.mxu0 0.0
        %986 = vmatprep.subr.mxu0 0.0
        %987 = vmatpush1.xpose.msra.mxu0 0.0
        %988 = vmatprep.subr.mxu0 0.0
        %989 = vmatpush1.xpose.msra.mxu0 0.0
        %990 = vmatprep.subr.mxu0 0.0
        %991 = vmatpush1.xpose.msra.mxu0 0.0
        %992 = vmatprep.subr.mxu0 0.0
        %993 = vmatpush1.xpose.msra.mxu0 0.0
        %994 = vmatprep.subr.mxu0 0.0
        %995 = vmatpush1.xpose.msra.mxu0 0.0
        %996 = vmatprep.subr.mxu0 0.0
        %997 = vmatpush1.xpose.msra.mxu0 0.0
        %998 = vmatprep.subr.mxu0 0.0
        %999 = vmatpush1.xpose.msra.mxu0 0.0
        %1000 = vmatprep.subr.mxu0 0.0
        %1001 = vmatpush1.xpose.msra.mxu0 0.0
        %1002 = vmatprep.subr.mxu0 0.0
        %1003 = vmatpush1.xpose.msra.mxu0 0.0
        %1004 = vmatprep.subr.mxu0 0.0
        %1005 = vmatpush1.xpose.msra.mxu0 0.0
        %1006 = vmatprep.subr.mxu0 0.0
        %1007 = vmatpush1.xpose.msra.mxu0 0.0
        %1008 = vmatprep.subr.mxu0 0.0
        %1009 = vmatpush1.xpose.msra.mxu0 0.0
        %1010 = vmatprep.subr.mxu0 0.0
        %1011 = vmatpush1.xpose.msra.mxu0 0.0
        %1012 = vmatprep.subr.mxu0 0.0
        %1013 = vmatpush1.xpose.msra.mxu0 0.0
        %1014 = vmatprep.subr.mxu0 0.0
        %1015 = vmatpush1.xpose.msra.mxu0 0.0
        %1016 = vmatprep.subr.mxu0 0.0
        %1017 = vmatpush1.xpose.msra.mxu0 0.0
        %1018 = vmatprep.mubr.f32.mxu0 0.0
        %1019 = vmatmul.mubr.f32.gmra.mrb[0].mxu0 %v946
        %v1020 = vpop.f32.mrb[0].mxu0
        %v1021 = vadd.f32 0.0, %v1020
        %v1022 = vpop.f32.mrb[0].mxu0
        %1023 = vdwg.mxu0
        %v1025 = vrot.slane %v1021, 1
        %vm1027 = vcmask 1046528
        %v1028 = vsel %vm1027, %v1025, 0.0
        %1030 = vrot.lane.b32.xlu0 %v1028, 9
        %v1031 = vpop.permute.xlu0 %1030
        %vm1033 = vcmask 72704
        %v1034 = vsel %vm1033, %v1021, %v1031
        %vm1035 = vcmask 146432
        %v1036 = vsel %vm1035, %v1034, 0.0
        %s1038 = sor.u32 256, 120
        %1039 = vrot.lane.b32.xlu0 %v1036, %s1038
        %v1040 = vpop.permute.xlu0 %1039
        %v1042 = vsel %vm944, %v936, 0
        %v1045 = vsel %vm944, %v706, 0
        %1047 = vmatprep.subr.mxu0 0.0
        %1048 = vmatpush1.xpose.msra.mxu0 %v1045
        %1049 = vmatprep.subr.mxu0 0.0
        %1050 = vmatpush1.xpose.msra.mxu0 0.0
        %1051 = vmatprep.subr.mxu0 0.0
        %1052 = vmatpush1.xpose.msra.mxu0 0.0
        %1053 = vmatprep.subr.mxu0 0.0
        %1054 = vmatpush1.xpose.msra.mxu0 0.0
        %1055 = vmatprep.subr.mxu0 0.0
        %1056 = vmatpush1.xpose.msra.mxu0 0.0
        %1057 = vmatprep.subr.mxu0 0.0
        %1058 = vmatpush1.xpose.msra.mxu0 0.0
        %1059 = vmatprep.subr.mxu0 0.0
        %1060 = vmatpush1.xpose.msra.mxu0 0.0
        %1061 = vmatprep.subr.mxu0 0.0
        %1062 = vmatpush1.xpose.msra.mxu0 0.0
        %1063 = vmatprep.subr.mxu0 0.0
        %1064 = vmatpush1.xpose.msra.mxu0 0.0
        %1065 = vmatprep.subr.mxu0 0.0
        %1066 = vmatpush1.xpose.msra.mxu0 0.0
        %1067 = vmatprep.subr.mxu0 0.0
        %1068 = vmatpush1.xpose.msra.mxu0 0.0
        %1069 = vmatprep.subr.mxu0 0.0
        %1070 = vmatpush1.xpose.msra.mxu0 0.0
        %1071 = vmatprep.subr.mxu0 0.0
        %1072 = vmatpush1.xpose.msra.mxu0 0.0
        %1073 = vmatprep.subr.mxu0 0.0
        %1074 = vmatpush1.xpose.msra.mxu0 0.0
        %1075 = vmatprep.subr.mxu0 0.0
        %1076 = vmatpush1.xpose.msra.mxu0 0.0
        %1077 = vmatprep.subr.mxu0 0.0
        %1078 = vmatpush1.xpose.msra.mxu0 0.0
        %1079 = vmatprep.subr.mxu0 0.0
        %1080 = vmatpush1.xpose.msra.mxu0 0.0
        %1081 = vmatprep.subr.mxu0 0.0
        %1082 = vmatpush1.xpose.msra.mxu0 0.0
        %1083 = vmatprep.subr.mxu0 0.0
        %1084 = vmatpush1.xpose.msra.mxu0 0.0
        %1085 = vmatprep.subr.mxu0 0.0
        %1086 = vmatpush1.xpose.msra.mxu0 0.0
        %1087 = vmatprep.subr.mxu0 0.0
        %1088 = vmatpush1.xpose.msra.mxu0 0.0
        %1089 = vmatprep.subr.mxu0 0.0
        %1090 = vmatpush1.xpose.msra.mxu0 0.0
        %1091 = vmatprep.subr.mxu0 0.0
        %1092 = vmatpush1.xpose.msra.mxu0 0.0
        %1093 = vmatprep.subr.mxu0 0.0
        %1094 = vmatpush1.xpose.msra.mxu0 0.0
        %1095 = vmatprep.subr.mxu0 0.0
        %1096 = vmatpush1.xpose.msra.mxu0 0.0
        %1097 = vmatprep.subr.mxu0 0.0
        %1098 = vmatpush1.xpose.msra.mxu0 0.0
        %1099 = vmatprep.subr.mxu0 0.0
        %1100 = vmatpush1.xpose.msra.mxu0 0.0
        %1101 = vmatprep.subr.mxu0 0.0
        %1102 = vmatpush1.xpose.msra.mxu0 0.0
        %1103 = vmatprep.subr.mxu0 0.0
        %1104 = vmatpush1.xpose.msra.mxu0 0.0
        %1105 = vmatprep.subr.mxu0 0.0
        %1106 = vmatpush1.xpose.msra.mxu0 0.0
        %1107 = vmatprep.subr.mxu0 0.0
        %1108 = vmatpush1.xpose.msra.mxu0 0.0
        %1109 = vmatprep.subr.mxu0 0.0
        %1110 = vmatpush1.xpose.msra.mxu0 0.0
        %1111 = vmatprep.mubr.f32.mxu0 0.0
        %1112 = vmatmul.mubr.f32.gmra.mrb[0].mxu0 %v1042
        %v1113 = vpop.f32.mrb[0].mxu0
        %v1114 = vadd.f32 %v1040, %v1113
        %v1115 = vpop.f32.mrb[0].mxu0
        %1116 = vdwg.mxu0
        %v1117 = vadd.f32 %v1114, %v943
        %vm1118 = vcmask 64512
        %v1119 = vsel %vm1118, %v1117, -inf
        %1120 = vmax.xlane.f32.xlu0 %v1119
        %v1121 = vpop.xlane.xlu0 %1120
        %v1122 = vsub.f32 %v1117, %v1121
        %v1123 = vmul.f32 %v1122, 1.442695
        %v1124 = vpow.pop %v1123
        %v1125 = vsel %vm1118, %v1124, 0.0
        %1126 = vadd.xlane.f32.xlu0 %v1125
        %v1127 = vpop.xlane.xlu0 %1126
        %v1128 = vrcp.pop %v1127
        %v1129 = vmul.f32 %v1124, %v1128
        %v1131 = vsel %vm1118, %v1129, 0
        %1133 = vmatprep.subr.mxu0 0.0
        %1134 = vmatpush1.msra.mxu0 %v812
        %1135 = vmatprep.subr.mxu0 0.0
        %1136 = vmatpush1.msra.mxu0 0.0
        %1137 = vmatprep.subr.mxu0 0.0
        %1138 = vmatpush1.msra.mxu0 0.0
        %1139 = vmatprep.subr.mxu0 0.0
        %1140 = vmatpush1.msra.mxu0 0.0
        %1141 = vmatprep.subr.mxu0 0.0
        %1142 = vmatpush1.msra.mxu0 0.0
        %1143 = vmatprep.subr.mxu0 0.0
        %1144 = vmatpush1.msra.mxu0 0.0
        %1145 = vmatprep.subr.mxu0 0.0
        %1146 = vmatpush1.msra.mxu0 0.0
        %1147 = vmatprep.subr.mxu0 0.0
        %1148 = vmatpush1.msra.mxu0 0.0
        %1149 = vmatprep.subr.mxu0 0.0
        %1150 = vmatpush1.msra.mxu0 0.0
        %1151 = vmatprep.subr.mxu0 0.0
        %1152 = vmatpush1.msra.mxu0 0.0
        %1153 = vmatprep.subr.mxu0 0.0
        %1154 = vmatpush1.msra.mxu0 0.0
        %1155 = vmatprep.subr.mxu0 0.0
        %1156 = vmatpush1.msra.mxu0 0.0
        %1157 = vmatprep.subr.mxu0 0.0
        %1158 = vmatpush1.msra.mxu0 0.0
        %1159 = vmatprep.subr.mxu0 0.0
        %1160 = vmatpush1.msra.mxu0 0.0
        %1161 = vmatprep.subr.mxu0 0.0
        %1162 = vmatpush1.msra.mxu0 0.0
        %1163 = vmatprep.subr.mxu0 0.0
        %1164 = vmatpush1.msra.mxu0 0.0
        %1165 = vmatprep.subr.mxu0 0.0
        %1166 = vmatpush1.msra.mxu0 0.0
        %1167 = vmatprep.subr.mxu0 0.0
        %1168 = vmatpush1.msra.mxu0 0.0
        %1169 = vmatprep.subr.mxu0 0.0
        %1170 = vmatpush1.msra.mxu0 0.0
        %1171 = vmatprep.subr.mxu0 0.0
        %1172 = vmatpush1.msra.mxu0 0.0
        %1173 = vmatprep.subr.mxu0 0.0
        %1174 = vmatpush1.msra.mxu0 0.0
        %1175 = vmatprep.subr.mxu0 0.0
        %1176 = vmatpush1.msra.mxu0 0.0
        %1177 = vmatprep.subr.mxu0 0.0
        %1178 = vmatpush1.msra.mxu0 0.0
        %1179 = vmatprep.subr.mxu0 0.0
        %1180 = vmatpush1.msra.mxu0 0.0
        %1181 = vmatprep.subr.mxu0 0.0
        %1182 = vmatpush1.msra.mxu0 0.0
        %1183 = vmatprep.subr.mxu0 0.0
        %1184 = vmatpush1.msra.mxu0 0.0
        %1185 = vmatprep.subr.mxu0 0.0
        %1186 = vmatpush1.msra.mxu0 0.0
        %1187 = vmatprep.subr.mxu0 0.0
        %1188 = vmatpush1.msra.mxu0 0.0
        %1189 = vmatprep.subr.mxu0 0.0
        %1190 = vmatpush1.msra.mxu0 0.0
        %1191 = vmatprep.subr.mxu0 0.0
        %1192 = vmatpush1.msra.mxu0 0.0
        %1193 = vmatprep.subr.mxu0 0.0
        %1194 = vmatpush1.msra.mxu0 0.0
        %1195 = vmatprep.subr.mxu0 0.0
        %1196 = vmatpush1.msra.mxu0 0.0
        %1197 = vmatprep.mubr.f32.mxu0 0.0
        %1198 = vmatmul.mubr.f32.gmra.mrb[0].mxu0 %v1131
        %v1199 = vpop.f32.mrb[0].mxu0
        %v1200 = vadd.f32 0.0, %v1199
        %v1201 = vpop.f32.mrb[0].mxu0
        %1202 = vdwg.mxu0
        %1203 = vrot.lane.b32.xlu0 %v942, 64
        %v1204 = vpop.permute.xlu0 %1203
        %1205 = vrot.lane.b32.xlu0 %v925, 64
        %v1206 = vpop.permute.xlu0 %1205
        %1207 = vrot.lane.b32.xlu0 %v928, 64
        %v1208 = vpop.permute.xlu0 %1207
        %v1209 = vsel %vm944, %v1204, 0
        %v1211 = vsel %vm944, %v1206, 0
        %v1213 = vsel %vm944, %v1208, 0
        %1215 = vmatprep.subr.mxu0 0.0
        %1216 = vmatpush1.xpose.msra.mxu0 %v1211
        %1217 = vmatprep.subr.mxu0 0.0
        %1218 = vmatpush1.xpose.msra.mxu0 %v1213
        %1219 = vmatprep.subr.mxu0 0.0
        %1220 = vmatpush1.xpose.msra.mxu0 0.0
        %1221 = vmatprep.subr.mxu0 0.0
        %1222 = vmatpush1.xpose.msra.mxu0 0.0
        %1223 = vmatprep.subr.mxu0 0.0
        %1224 = vmatpush1.xpose.msra.mxu0 0.0
        %1225 = vmatprep.subr.mxu0 0.0
        %1226 = vmatpush1.xpose.msra.mxu0 0.0
        %1227 = vmatprep.subr.mxu0 0.0
        %1228 = vmatpush1.xpose.msra.mxu0 0.0
        %1229 = vmatprep.subr.mxu0 0.0
        %1230 = vmatpush1.xpose.msra.mxu0 0.0
        %1231 = vmatprep.subr.mxu0 0.0
        %1232 = vmatpush1.xpose.msra.mxu0 0.0
        %1233 = vmatprep.subr.mxu0 0.0
        %1234 = vmatpush1.xpose.msra.mxu0 0.0
        %1235 = vmatprep.subr.mxu0 0.0
        %1236 = vmatpush1.xpose.msra.mxu0 0.0
        %1237 = vmatprep.subr.mxu0 0.0
        %1238 = vmatpush1.xpose.msra.mxu0 0.0
        %1239 = vmatprep.subr.mxu0 0.0
        %1240 = vmatpush1.xpose.msra.mxu0 0.0
        %1241 = vmatprep.subr.mxu0 0.0
        %1242 = vmatpush1.xpose.msra.mxu0 0.0
        %1243 = vmatprep.subr.mxu0 0.0
        %1244 = vmatpush1.xpose.msra.mxu0 0.0
        %1245 = vmatprep.subr.mxu0 0.0
        %1246 = vmatpush1.xpose.msra.mxu0 0.0
        %1247 = vmatprep.subr.mxu0 0.0
        %1248 = vmatpush1.xpose.msra.mxu0 0.0
        %1249 = vmatprep.subr.mxu0 0.0
        %1250 = vmatpush1.xpose.msra.mxu0 0.0
        %1251 = vmatprep.subr.mxu0 0.0
        %1252 = vmatpush1.xpose.msra.mxu0 0.0
        %1253 = vmatprep.subr.mxu0 0.0
        %1254 = vmatpush1.xpose.msra.mxu0 0.0
        %1255 = vmatprep.subr.mxu0 0.0
        %1256 = vmatpush1.xpose.msra.mxu0 0.0
        %1257 = vmatprep.subr.mxu0 0.0
        %1258 = vmatpush1.xpose.msra.mxu0 0.0
        %1259 = vmatprep.subr.mxu0 0.0
        %1260 = vmatpush1.xpose.msra.mxu0 0.0
        %1261 = vmatprep.subr.mxu0 0.0
        %1262 = vmatpush1.xpose.msra.mxu0 0.0
        %1263 = vmatprep.subr.mxu0 0.0
        %1264 = vmatpush1.xpose.msra.mxu0 0.0
        %1265 = vmatprep.subr.mxu0 0.0
        %1266 = vmatpush1.xpose.msra.mxu0 0.0
        %1267 = vmatprep.subr.mxu0 0.0
        %1268 = vmatpush1.xpose.msra.mxu0 0.0
        %1269 = vmatprep.subr.mxu0 0.0
        %1270 = vmatpush1.xpose.msra.mxu0 0.0
        %1271 = vmatprep.subr.mxu0 0.0
        %1272 = vmatpush1.xpose.msra.mxu0 0.0
        %1273 = vmatprep.subr.mxu0 0.0
        %1274 = vmatpush1.xpose.msra.mxu0 0.0
        %1275 = vmatprep.subr.mxu0 0.0
        %1276 = vmatpush1.xpose.msra.mxu0 0.0
        %1277 = vmatprep.subr.mxu0 0.0
        %1278 = vmatpush1.xpose.msra.mxu0 0.0
        %1279 = vmatprep.mubr.f32.mxu0 0.0
        %1280 = vmatmul.mubr.f32.gmra.mrb[0].mxu0 %v1209
        %v1281 = vpop.f32.mrb[0].mxu0
        %v1282 = vadd.f32 0.0, %v1281
        %v1283 = vpop.f32.mrb[0].mxu0
        %1284 = vdwg.mxu0
        %v1286 = vrot.slane %v1282, 1
        %v1288 = vsel %vm1027, %v1286, 0.0
        %1290 = vrot.lane.b32.xlu0 %v1288, 9
        %v1291 = vpop.permute.xlu0 %1290
        %v1293 = vsel %vm1033, %v1282, %v1291
        %v1294 = vsel %vm1035, %v1293, 0.0
        %s1296 = sor.u32 256, 120
        %1297 = vrot.lane.b32.xlu0 %v1294, %s1296
        %v1298 = vpop.permute.xlu0 %1297
        %1299 = vrot.lane.b32.xlu0 %v936, 64
        %v1300 = vpop.permute.xlu0 %1299
        %1301 = vrot.lane.b32.xlu0 %v706, 64
        %v1302 = vpop.permute.xlu0 %1301
        %v1303 = vsel %vm944, %v1300, 0
        %v1305 = vsel %vm944, %v1302, 0
        %1307 = vmatprep.subr.mxu0 0.0
        %1308 = vmatpush1.xpose.msra.mxu0 %v1305
        %1309 = vmatprep.subr.mxu0 0.0
        %1310 = vmatpush1.xpose.msra.mxu0 0.0
        %1311 = vmatprep.subr.mxu0 0.0
        %1312 = vmatpush1.xpose.msra.mxu0 0.0
        %1313 = vmatprep.subr.mxu0 0.0
        %1314 = vmatpush1.xpose.msra.mxu0 0.0
        %1315 = vmatprep.subr.mxu0 0.0
        %1316 = vmatpush1.xpose.msra.mxu0 0.0
        %1317 = vmatprep.subr.mxu0 0.0
        %1318 = vmatpush1.xpose.msra.mxu0 0.0
        %1319 = vmatprep.subr.mxu0 0.0
        %1320 = vmatpush1.xpose.msra.mxu0 0.0
        %1321 = vmatprep.subr.mxu0 0.0
        %1322 = vmatpush1.xpose.msra.mxu0 0.0
        %1323 = vmatprep.subr.mxu0 0.0
        %1324 = vmatpush1.xpose.msra.mxu0 0.0
        %1325 = vmatprep.subr.mxu0 0.0
        %1326 = vmatpush1.xpose.msra.mxu0 0.0
        %1327 = vmatprep.subr.mxu0 0.0
        %1328 = vmatpush1.xpose.msra.mxu0 0.0
        %1329 = vmatprep.subr.mxu0 0.0
        %1330 = vmatpush1.xpose.msra.mxu0 0.0
        %1331 = vmatprep.subr.mxu0 0.0
        %1332 = vmatpush1.xpose.msra.mxu0 0.0
        %1333 = vmatprep.subr.mxu0 0.0
        %1334 = vmatpush1.xpose.msra.mxu0 0.0
        %1335 = vmatprep.subr.mxu0 0.0
        %1336 = vmatpush1.xpose.msra.mxu0 0.0
        %1337 = vmatprep.subr.mxu0 0.0
        %1338 = vmatpush1.xpose.msra.mxu0 0.0
        %1339 = vmatprep.subr.mxu0 0.0
        %1340 = vmatpush1.xpose.msra.mxu0 0.0
        %1341 = vmatprep.subr.mxu0 0.0
        %1342 = vmatpush1.xpose.msra.mxu0 0.0
        %1343 = vmatprep.subr.mxu0 0.0
        %1344 = vmatpush1.xpose.msra.mxu0 0.0
        %1345 = vmatprep.subr.mxu0 0.0
        %1346 = vmatpush1.xpose.msra.mxu0 0.0
        %1347 = vmatprep.subr.mxu0 0.0
        %1348 = vmatpush1.xpose.msra.mxu0 0.0
        %1349 = vmatprep.subr.mxu0 0.0
        %1350 = vmatpush1.xpose.msra.mxu0 0.0
        %1351 = vmatprep.subr.mxu0 0.0
        %1352 = vmatpush1.xpose.msra.mxu0 0.0
        %1353 = vmatprep.subr.mxu0 0.0
        %1354 = vmatpush1.xpose.msra.mxu0 0.0
        %1355 = vmatprep.subr.mxu0 0.0
        %1356 = vmatpush1.xpose.msra.mxu0 0.0
        %1357 = vmatprep.subr.mxu0 0.0
        %1358 = vmatpush1.xpose.msra.mxu0 0.0
        %1359 = vmatprep.subr.mxu0 0.0
        %1360 = vmatpush1.xpose.msra.mxu0 0.0
        %1361 = vmatprep.subr.mxu0 0.0
        %1362 = vmatpush1.xpose.msra.mxu0 0.0
        %1363 = vmatprep.subr.mxu0 0.0
        %1364 = vmatpush1.xpose.msra.mxu0 0.0
        %1365 = vmatprep.subr.mxu0 0.0
        %1366 = vmatpush1.xpose.msra.mxu0 0.0
        %1367 = vmatprep.subr.mxu0 0.0
        %1368 = vmatpush1.xpose.msra.mxu0 0.0
        %1369 = vmatprep.subr.mxu0 0.0
        %1370 = vmatpush1.xpose.msra.mxu0 0.0
        %1371 = vmatprep.mubr.f32.mxu0 0.0
        %1372 = vmatmul.mubr.f32.gmra.mrb[0].mxu0 %v1303
        %v1373 = vpop.f32.mrb[0].mxu0
        %v1374 = vadd.f32 %v1298, %v1373
        %v1375 = vpop.f32.mrb[0].mxu0
        %1376 = vdwg.mxu0
        %v1377 = vadd.f32 %v1374, %v943
        %v1378 = vsel %vm1118, %v1377, -inf
        %1379 = vmax.xlane.f32.xlu0 %v1378
        %v1380 = vpop.xlane.xlu0 %1379
        %v1381 = vsub.f32 %v1377, %v1380
        %v1382 = vmul.f32 %v1381, 1.442695
        %v1383 = vpow.pop %v1382
        %v1384 = vsel %vm1118, %v1383, 0.0
        %1385 = vadd.xlane.f32.xlu0 %v1384
        %v1386 = vpop.xlane.xlu0 %1385
        %v1387 = vrcp.pop %v1386
        %v1388 = vmul.f32 %v1383, %v1387
        %1390 = vrot.lane.b32.xlu0 %v812, 64
        %v1391 = vpop.permute.xlu0 %1390
        %v1394 = vsel %vm1118, %v1388, 0
        %1396 = vmatprep.subr.mxu0 0.0
        %1397 = vmatpush1.msra.mxu0 %v1391
        %1398 = vmatprep.subr.mxu0 0.0
        %1399 = vmatpush1.msra.mxu0 0.0
        %1400 = vmatprep.subr.mxu0 0.0
        %1401 = vmatpush1.msra.mxu0 0.0
        %1402 = vmatprep.subr.mxu0 0.0
        %1403 = vmatpush1.msra.mxu0 0.0
        %1404 = vmatprep.subr.mxu0 0.0
        %1405 = vmatpush1.msra.mxu0 0.0
        %1406 = vmatprep.subr.mxu0 0.0
        %1407 = vmatpush1.msra.mxu0 0.0
        %1408 = vmatprep.subr.mxu0 0.0
        %1409 = vmatpush1.msra.mxu0 0.0
        %1410 = vmatprep.subr.mxu0 0.0
        %1411 = vmatpush1.msra.mxu0 0.0
        %1412 = vmatprep.subr.mxu0 0.0
        %1413 = vmatpush1.msra.mxu0 0.0
        %1414 = vmatprep.subr.mxu0 0.0
        %1415 = vmatpush1.msra.mxu0 0.0
        %1416 = vmatprep.subr.mxu0 0.0
        %1417 = vmatpush1.msra.mxu0 0.0
        %1418 = vmatprep.subr.mxu0 0.0
        %1419 = vmatpush1.msra.mxu0 0.0
        %1420 = vmatprep.subr.mxu0 0.0
        %1421 = vmatpush1.msra.mxu0 0.0
        %1422 = vmatprep.subr.mxu0 0.0
        %1423 = vmatpush1.msra.mxu0 0.0
        %1424 = vmatprep.subr.mxu0 0.0
        %1425 = vmatpush1.msra.mxu0 0.0
        %1426 = vmatprep.subr.mxu0 0.0
        %1427 = vmatpush1.msra.mxu0 0.0
        %1428 = vmatprep.subr.mxu0 0.0
        %1429 = vmatpush1.msra.mxu0 0.0
        %1430 = vmatprep.subr.mxu0 0.0
        %1431 = vmatpush1.msra.mxu0 0.0
        %1432 = vmatprep.subr.mxu0 0.0
        %1433 = vmatpush1.msra.mxu0 0.0
        %1434 = vmatprep.subr.mxu0 0.0
        %1435 = vmatpush1.msra.mxu0 0.0
        %1436 = vmatprep.subr.mxu0 0.0
        %1437 = vmatpush1.msra.mxu0 0.0
        %1438 = vmatprep.subr.mxu0 0.0
        %1439 = vmatpush1.msra.mxu0 0.0
        %1440 = vmatprep.subr.mxu0 0.0
        %1441 = vmatpush1.msra.mxu0 0.0
        %1442 = vmatprep.subr.mxu0 0.0
        %1443 = vmatpush1.msra.mxu0 0.0
        %1444 = vmatprep.subr.mxu0 0.0
        %1445 = vmatpush1.msra.mxu0 0.0
        %1446 = vmatprep.subr.mxu0 0.0
        %1447 = vmatpush1.msra.mxu0 0.0
        %1448 = vmatprep.subr.mxu0 0.0
        %1449 = vmatpush1.msra.mxu0 0.0
        %1450 = vmatprep.subr.mxu0 0.0
        %1451 = vmatpush1.msra.mxu0 0.0
        %1452 = vmatprep.subr.mxu0 0.0
        %1453 = vmatpush1.msra.mxu0 0.0
        %1454 = vmatprep.subr.mxu0 0.0
        %1455 = vmatpush1.msra.mxu0 0.0
        %1456 = vmatprep.subr.mxu0 0.0
        %1457 = vmatpush1.msra.mxu0 0.0
        %1458 = vmatprep.subr.mxu0 0.0
        %1459 = vmatpush1.msra.mxu0 0.0
        %1460 = vmatprep.mubr.f32.mxu0 0.0
        %1461 = vmatmul.mubr.f32.gmra.mrb[0].mxu0 %v1394
        %v1462 = vpop.f32.mrb[0].mxu0
        %v1463 = vadd.f32 0.0, %v1462
        %v1464 = vpop.f32.mrb[0].mxu0
        %1465 = vdwg.mxu0
        %1467 = vrot.lane.b32.xlu0 %v1463, 64
        %v1468 = vpop.permute.xlu0 %1467
        %v1470 = vsel %vm944, %v1200, %v1468
        %1471 = vst [vmem:[%s497] sm:$0xff] %v1470
        %v1472 = vld [vmem:[#allocation11] sm:$0xff]
        %v1473 = vld [vmem:[#allocation11 + $0x8] sm:$0xff]
        %v1474 = vld [vmem:[#allocation11 + $0x10] sm:$0xff]
        %v1475 = vld [vmem:[#allocation11 + $0x18] sm:$0xff]
        %v1476 = vld [vmem:[#allocation11 + $0x20] sm:$0xff]
        %v1477 = vld [vmem:[#allocation11 + $0x28] sm:$0xff]
        %v1478 = vld [vmem:[#allocation11 + $0x30] sm:$0xff]
        %v1479 = vld [vmem:[#allocation11 + $0x38] sm:$0xff]
        %v1480 = vld [vmem:[#allocation11 + $0x40] sm:$0xff]
        %v1481 = vld [vmem:[#allocation11 + $0x48] sm:$0xff]
        %v1482 = vld [vmem:[#allocation11 + $0x50] sm:$0xff]
        %v1483 = vld [vmem:[#allocation11 + $0x58] sm:$0xff]
        %v1484 = vld [vmem:[#allocation11 + $0x60] sm:$0xff]
        %v1485 = vld [vmem:[#allocation11 + $0x68] sm:$0xff]
        %v1486 = vld [vmem:[#allocation11 + $0x70] sm:$0xff]
        %v1487 = vld [vmem:[#allocation11 + $0x78] sm:$0xff]
        %1488 = vmatprep.subr.mxu0 0.0
        %1489 = vmatpush1.msra.mxu0 %v1472
        %1490 = vmatprep.subr.mxu0 0.0
        %1491 = vmatpush1.msra.mxu0 %v1473
        %1492 = vmatprep.subr.mxu0 0.0
        %1493 = vmatpush1.msra.mxu0 %v1474
        %1494 = vmatprep.subr.mxu0 0.0
        %1495 = vmatpush1.msra.mxu0 %v1475
        %1496 = vmatprep.subr.mxu0 0.0
        %1497 = vmatpush1.msra.mxu0 %v1476
        %1498 = vmatprep.subr.mxu0 0.0
        %1499 = vmatpush1.msra.mxu0 %v1477
        %1500 = vmatprep.subr.mxu0 0.0
        %1501 = vmatpush1.msra.mxu0 %v1478
        %1502 = vmatprep.subr.mxu0 0.0
        %1503 = vmatpush1.msra.mxu0 %v1479
        %1504 = vmatprep.subr.mxu0 0.0
        %1505 = vmatpush1.msra.mxu0 %v1480
        %1506 = vmatprep.subr.mxu0 0.0
        %1507 = vmatpush1.msra.mxu0 %v1481
        %1508 = vmatprep.subr.mxu0 0.0
        %1509 = vmatpush1.msra.mxu0 %v1482
        %1510 = vmatprep.subr.mxu0 0.0
        %1511 = vmatpush1.msra.mxu0 %v1483
        %1512 = vmatprep.subr.mxu0 0.0
        %1513 = vmatpush1.msra.mxu0 %v1484
        %1514 = vmatprep.subr.mxu0 0.0
        %1515 = vmatpush1.msra.mxu0 %v1485
        %1516 = vmatprep.subr.mxu0 0.0
        %1517 = vmatpush1.msra.mxu0 %v1486
        %1518 = vmatprep.subr.mxu0 0.0
        %1519 = vmatpush1.msra.mxu0 %v1487
        %1520 = vmatprep.subr.mxu0 0.0
        %1521 = vmatpush1.msra.mxu0 0.0
        %1522 = vmatprep.subr.mxu0 0.0
        %1523 = vmatpush1.msra.mxu0 0.0
        %1524 = vmatprep.subr.mxu0 0.0
        %1525 = vmatpush1.msra.mxu0 0.0
        %1526 = vmatprep.subr.mxu0 0.0
        %1527 = vmatpush1.msra.mxu0 0.0
        %1528 = vmatprep.subr.mxu0 0.0
        %1529 = vmatpush1.msra.mxu0 0.0
        %1530 = vmatprep.subr.mxu0 0.0
        %1531 = vmatpush1.msra.mxu0 0.0
        %1532 = vmatprep.subr.mxu0 0.0
        %1533 = vmatpush1.msra.mxu0 0.0
        %1534 = vmatprep.subr.mxu0 0.0
        %1535 = vmatpush1.msra.mxu0 0.0
        %1536 = vmatprep.subr.mxu0 0.0
        %1537 = vmatpush1.msra.mxu0 0.0
        %1538 = vmatprep.subr.mxu0 0.0
        %1539 = vmatpush1.msra.mxu0 0.0
        %1540 = vmatprep.subr.mxu0 0.0
        %1541 = vmatpush1.msra.mxu0 0.0
        %1542 = vmatprep.subr.mxu0 0.0
        %1543 = vmatpush1.msra.mxu0 0.0
        %1544 = vmatprep.subr.mxu0 0.0
        %1545 = vmatpush1.msra.mxu0 0.0
        %1546 = vmatprep.subr.mxu0 0.0
        %1547 = vmatpush1.msra.mxu0 0.0
        %1548 = vmatprep.subr.mxu0 0.0
        %1549 = vmatpush1.msra.mxu0 0.0
        %1550 = vmatprep.subr.mxu0 0.0
        %1551 = vmatpush1.msra.mxu0 0.0
        %1552 = vmatprep.mubr.f32.mxu0 0.0
        %1553 = vmatmul.mubr.f32.gmra.mrb[0].mxu0 %v1470
        %v1554 = vpop.f32.mrb[0].mxu0
        %v1555 = vadd.f32 0.0, %v1554
        %v1556 = vpop.f32.mrb[0].mxu0
        %1557 = vdwg.mxu0
        %1558 = vst [vmem:[%s490] sm:$0xff] %v1555
        %s1559 = sand.u32 %s233, 1
        %s1560 = scalar_lea.sflag [#allocation4], %s1559
        %s1561 = sand.u32 %s233, 1
        %s1562 = smul.addr %s1561, 8
        %s1563 = scalar_lea.vmem [#allocation13], %s1562
        %s1564 = sand.u32 %s259, 1
        %s1565 = scalar_lea.sflag [#allocation15], %s1564
        %s1566 = sand.u32 %s259, 1
        %s1567 = smul.addr %s1566, 8
        %s1568 = scalar_lea.vmem [#allocation14], %s1567
        // Predicated region
        $region77: #{tpu_custom_call.1} parent=51 // pred_check
          %p1569 = pneg %p243
        $region78: #{tpu_custom_call.1} parent=51 // pred_check_branch
          %1571 = sbr.rel (%p1569) target = $region80
        $region79: #{tpu_custom_call.1} parent=51 // pred_region
          %s1573 = ssub.s32 128, 128
          %1574 = vsyncadd %s1560, %s1573
          %s1575 = smul.addr %s37, 128
          %s1576 = scalar_lea.hbm %s8, %s1575
          %s1578 = sshll.u32 %s1563, 4
          %s1579 = int_to_ptr.vmem [resolvable:$true] %s1578
          %1581 = dma.vmem_to_hbm [thread:$0]  %s1579, 128, %s1576, %s1560
        $region80: #{tpu_custom_call.1} parent=51 // pred_fallthru
          _
        // Predicated region
        $region81: #{tpu_custom_call.1} parent=51 // pred_check
          %p1582 = pneg %p269
        $region82: #{tpu_custom_call.1} parent=51 // pred_check_branch
          %1584 = sbr.rel (%p1582) target = $region84
        $region83: #{tpu_custom_call.1} parent=51 // pred_region
          %s1586 = ssub.s32 128, 128
          %1587 = vsyncadd %s1565, %s1586
          %s1588 = smul.addr %s37, 128
          %s1589 = scalar_lea.hbm %s9, %s1588
          %s1591 = sshll.u32 %s1568, 4
          %s1592 = int_to_ptr.vmem [resolvable:$true] %s1591
          %1594 = dma.vmem_to_hbm [thread:$0]  %s1592, 128, %s1589, %s1565
        $region84: #{tpu_custom_call.1} parent=51 // pred_fallthru
          _
      $region52: #{tpu_custom_call.1} parent=5 // pred_fallthru
        _
      %p1595 = scmp.le.s32.totalorder 2, %s32
      // Predicated region
      $region85: #{tpu_custom_call.1} parent=5 // pred_check
        %p1596 = pneg %p1595
      $region86: #{tpu_custom_call.1} parent=5 // pred_check_branch
        %1598 = sbr.rel (%p1596) target = $region88
      $region87: #{tpu_custom_call.1} parent=5 // pred_region
        %s1599 = ssub.s32 %s32, 2
        // Predicated region
        $region89: #{tpu_custom_call.1} parent=87 // pred_check
          %p1600 = pneg %p249
        $region90: #{tpu_custom_call.1} parent=87 // pred_check_branch
          %1602 = sbr.rel (%p1600) target = $region92
        $region91: #{tpu_custom_call.1} parent=87 // pred_region
          %s1603 = sand.u32 %s234, 1
          %s1604 = scalar_lea.sflag [#allocation4], %s1603
          %s1605 = sand.u32 %s234, 1
          %s1606 = smul.addr %s1605, 8
          %s1607 = scalar_lea.vmem [#allocation13], %s1606
          %1608 = dma.done %s1604, 128
        $region92: #{tpu_custom_call.1} parent=87 // pred_fallthru
          _
        // Predicated region
        $region93: #{tpu_custom_call.1} parent=87 // pred_check
          %p1609 = pneg %p275
        $region94: #{tpu_custom_call.1} parent=87 // pred_check_branch
          %1611 = sbr.rel (%p1609) target = $region96
        $region95: #{tpu_custom_call.1} parent=87 // pred_region
          %s1612 = sand.u32 %s260, 1
          %s1613 = scalar_lea.sflag [#allocation15], %s1612
          %s1614 = sand.u32 %s260, 1
          %s1615 = smul.addr %s1614, 8
          %s1616 = scalar_lea.vmem [#allocation14], %s1615
          %1617 = dma.done %s1613, 128
        $region96: #{tpu_custom_call.1} parent=87 // pred_fallthru
          _
      $region88: #{tpu_custom_call.1} parent=5 // pred_fallthru
        _
    $region6: #{tpu_custom_call.1} parent=1 // loop_footer
      %s36 = sadd.s32 1, %s32
    $region7: #{tpu_custom_call.1} parent=1 // loop_footer_branch
      %31 = sbr.rel target = $region3
    $region8: #{tpu_custom_call.1} parent=1 // loop_exit
      _
    %1618 = vsyncpa [#allocation3], 1
    %s1619 = scalar_lea.sflag [#allocation3], 1
    %1620 = vsyncpa %s1619, 1
    %1621 = vsyncpa [#allocation6], 1
    %s1622 = scalar_lea.sflag [#allocation6], 1
    %1623 = vsyncpa %s1622, 1
    %1624 = vsyncpa [#allocation9], 1
    %s1625 = scalar_lea.sflag [#allocation9], 1
    %1626 = vsyncpa %s1625, 1
    %1627 = vsyncpa [#allocation12], 1
    %1628 = vsyncpa [#allocation4], 1
    %s1629 = scalar_lea.sflag [#allocation4], 1
    %1630 = vsyncpa %s1629, 1
    %1631 = vsyncpa [#allocation15], 1
    %s1632 = scalar_lea.sflag [#allocation15], 1
    %1633 = vsyncpa %s1632, 1

</llo_original>
